<compile_context>
chip_gen: v5e
topology: v5e:2x2
jax: 0.10.0
libtpu: 0.0.40
codegen_flags: <defaults>
</compile_context>

<pallas_src>
import jax
import jax.numpy as jnp
from jax.experimental import pallas as pl
from jax.experimental.pallas import tpu as pltpu

VMEM = pl.BlockSpec(memory_space=pltpu.MemorySpace.VMEM)


# ----------------------------- BiGRU + linear1 (single fused kernel) -------------------

def bigru_kernel(x_ref, wi_ref, wh_ref, w1_ref, b1_ref, rx_ref, rh_ref,
                 gif_s, gib_s, yf_s, yb_s):
    """Both GRU directions interleaved in one fori_loop (fwd step t, bwd step T-1-t).
    Input projections (x @ W_ih) and linear1 are hoisted into single wide matmuls;
    only the tiny [B,I]@[I,3I] hidden matmuls remain inside the recurrence.
    Outputs: rnn_x = tanh(linear1([y_fwd|y_bwd])) [T,B,I] and rnnh = tanh(h_f+h_b) [B,I]."""
    T, B, G = x_ref.shape
    I = wh_ref.shape[1]

    x2d = x_ref[...].reshape(T * B, G)
    gif_s[...] = jnp.dot(x2d, wi_ref[0],
                         preferred_element_type=jnp.float32).reshape(T, B, 3 * I)
    gib_s[...] = jnp.dot(x2d, wi_ref[1],
                         preferred_element_type=jnp.float32).reshape(T, B, 3 * I)
    whf = wh_ref[0]
    whb = wh_ref[1]

    def step(s, carry):
        hf, hb = carry
        tb = T - 1 - s
        gif = gif_s[s]                                      # [B, 3I]
        gib = gib_s[tb]
        ghf = jnp.dot(hf, whf, preferred_element_type=jnp.float32)
        ghb = jnp.dot(hb, whb, preferred_element_type=jnp.float32)
        rf = jax.nn.sigmoid(gif[:, :I] + ghf[:, :I])
        zf = jax.nn.sigmoid(gif[:, I:2 * I] + ghf[:, I:2 * I])
        nf = jnp.tanh(gif[:, 2 * I:] + rf * ghf[:, 2 * I:])
        hf = (1.0 - zf) * nf + zf * hf
        rb = jax.nn.sigmoid(gib[:, :I] + ghb[:, :I])
        zb = jax.nn.sigmoid(gib[:, I:2 * I] + ghb[:, I:2 * I])
        nb = jnp.tanh(gib[:, 2 * I:] + rb * ghb[:, 2 * I:])
        hb = (1.0 - zb) * nb + zb * hb
        yf_s[s] = hf
        yb_s[tb] = hb
        return hf, hb

    h0 = jnp.zeros((B, I), jnp.float32)
    hf_last, hb_last = jax.lax.fori_loop(0, T, step, (h0, h0))
    rh_ref[...] = jnp.tanh(hf_last + hb_last)

    # linear1 split per direction (no [T*B, 2I] concat), one wide matmul each.
    p = (jnp.dot(yf_s[...].reshape(T * B, I), w1_ref[0],
                 preferred_element_type=jnp.float32)
         + jnp.dot(yb_s[...].reshape(T * B, I), w1_ref[1],
                   preferred_element_type=jnp.float32)
         + b1_ref[...])
    rx_ref[...] = jnp.tanh(p).reshape(T, B, I)


def bigru_forward(x, wi, wh, w1, b1):
    T, B, _ = x.shape
    I = wh.shape[1]
    return pl.pallas_call(
        bigru_kernel,
        out_shape=(jax.ShapeDtypeStruct((T, B, I), jnp.float32),
                   jax.ShapeDtypeStruct((B, I), jnp.float32)),
        in_specs=[VMEM] * 5,
        out_specs=(VMEM, VMEM),
        scratch_shapes=[pltpu.VMEM((T, B, 3 * I), jnp.float32),   # fwd input proj
                        pltpu.VMEM((T, B, 3 * I), jnp.float32),   # bwd input proj
                        pltpu.VMEM((T, B, I), jnp.float32),       # y_fwd
                        pltpu.VMEM((T, B, I), jnp.float32)],      # y_bwd
    )(x, wi, wh, w1, b1)


# ----------------------------- per-layer node projections (row-tiled) ------------------

def prep_kernel(xk_ref, pu_ref, wx_ref, wpu_ref, gi_ref, ghd_ref):
    """proj = x_k @ W_x9 + pos_ub @ W_pu9 (no const9 materialization), emitted gate-major:
    gi  [3, R, S] = rnn1 input-proj gates  (used from the SRC side of each edge)
    ghd [6, R, S] = rnn1 hidden-proj + rnn2 hidden-proj gates (used from the DST side)."""
    S = gi_ref.shape[-1]
    proj = (jnp.dot(xk_ref[...], wx_ref[...], preferred_element_type=jnp.float32)
            + jnp.dot(pu_ref[...], wpu_ref[...], preferred_element_type=jnp.float32))
    for g in range(3):
        gi_ref[g] = proj[:, g * S:(g + 1) * S]
    for g in range(6):
        ghd_ref[g] = proj[:, (3 + g) * S:(4 + g) * S]


def _row_tile(n):
    for cand in (512, 256, 128, 64, 32, 16, 8):
        if cand <= n and n % cand == 0:
            return cand
    return n


def conv_prep(x_k, pos_ub, w_x9, w_pu9, S):
    N, I = x_k.shape
    PU = pos_ub.shape[1]
    R = _row_tile(N)
    return pl.pallas_call(
        prep_kernel,
        out_shape=(jax.ShapeDtypeStruct((3, N, S), jnp.float32),
                   jax.ShapeDtypeStruct((6, N, S), jnp.float32)),
        grid=(N // R,),
        in_specs=[
            pl.BlockSpec((R, I), lambda r: (r, 0)),
            pl.BlockSpec((R, PU), lambda r: (r, 0)),
            pl.BlockSpec((I, 9 * S), lambda r: (0, 0)),
            pl.BlockSpec((PU, 9 * S), lambda r: (0, 0)),
        ],
        out_specs=(pl.BlockSpec((3, R, S), lambda r: (0, r, 0)),
                   pl.BlockSpec((6, R, S), lambda r: (0, r, 0))),
        compiler_params=pltpu.CompilerParams(dimension_semantics=("parallel",)),
    )(x_k, pos_ub, w_x9, w_pu9)


# ----------------------------- gated GCN conv (block-sparse, data-dependent DMA) -------

def _make_conv_kernel(S, td, fuse_tail):
    cd = 8 if td % 8 == 0 else td        # dst-chunk: keeps pairwise temps ~[8, ts, S]
    n_chunks = td // cd

    def kernel(col_ref, nnz_ref, ghd_ref, gi1_ref, a_ref, xk_ref, pu_ref,
               wi2_ref, wo_ref, bo_ref, *rest):
        if fuse_tail:
            (x1_ref, xr_ref, g_ref, b_ref, w2a_ref, w2b_ref, b2_ref,
             o_ref, agg_ref) = rest
        else:
            o_ref, agg_ref = rest

        i = pl.program_id(0)
        k = pl.program_id(1)

        @pl.when(k == 0)
        def _():
            agg_ref[...] = jnp.zeros_like(agg_ref)

        # padded grid steps (k >= nnz[i]) re-reference the last valid block index so the
        # DMA is a no-op (same index) and the compute is skipped here.
        @pl.when(k < nnz_ref[i])
        def _():
            gi_r = gi1_ref[0]                               # [ts, S]  src gate terms
            gi_z = gi1_ref[1]
            gi_n = gi1_ref[2]

            def chunk(c, carry):
                r0 = pl.multiple_of(c * cd, cd)
                rows = pl.ds(r0, cd)
                gh_r = ghd_ref[0, rows, :]                  # [cd, S]  dst gate terms
                gh_z = ghd_ref[1, rows, :]
                gh_n = ghd_ref[2, rows, :]
                xd = jnp.concatenate([xk_ref[rows, :], pu_ref[rows, :]], axis=1)
                r = jax.nn.sigmoid(gi_r[None, :, :] + gh_r[:, None, :])
                z = jax.nn.sigmoid(gi_z[None, :, :] + gh_z[:, None, :])
                n = jnp.tanh(gi_n[None, :, :] + r * gh_n[:, None, :])
                msg = (1.0 - z) * n + z * xd[:, None, :]    # gated messages [cd, ts, S]
                a_c = a_ref[rows, :]                        # [cd, ts] normalized adj
                agg_ref[rows, :] += jnp.sum(a_c[:, :, None] * msg, axis=1)
                return carry

            jax.lax.fori_loop(0, n_chunks, chunk, 0)

        @pl.when(k == pl.num_programs(1) - 1)
        def _():
            agg = agg_ref[...]
            xd = jnp.concatenate([xk_ref[...], pu_ref[...]], axis=1)      # [td, S]
            gi2 = jnp.dot(agg, wi2_ref[...], preferred_element_type=jnp.float32)
            r2 = jax.nn.sigmoid(gi2[:, :S] + ghd_ref[3])
            z2 = jax.nn.sigmoid(gi2[:, S:2 * S] + ghd_ref[4])
            n2 = jnp.tanh(gi2[:, 2 * S:] + r2 * ghd_ref[5])
            h = (1.0 - z2) * n2 + z2 * xd                    # GRUCell2 node update
            x_out = jnp.tanh(
                jnp.dot(h, wo_ref[...], preferred_element_type=jnp.float32)
                + bo_ref[...])                               # tanh(conv_k(.))  [td, I]
            if fuse_tail:
                # fused tail: x1 + x2 + x3 -> tanh -> LayerNorm -> [rnn_x|xg]@W2 -> tanh
                s = jnp.tanh(x1_ref[...] + xk_ref[...] + x_out)
                mean = jnp.mean(s, axis=-1, keepdims=True)
                var = jnp.mean((s - mean) ** 2, axis=-1, keepdims=True)
                xg = (s - mean) * jax.lax.rsqrt(var + 1e-5) * g_ref[...] + b_ref[...]
                o_ref[...] = jnp.tanh(
                    jnp.dot(xr_ref[...], w2a_ref[...],
                            preferred_element_type=jnp.float32)
                    + jnp.dot(xg, w2b_ref[...], preferred_element_type=jnp.float32)
                    + b2_ref[...])
            else:
                o_ref[...] = x_out

    return kernel


def _conv_tiles(n):
    """dst tile: multiple of 8 dividing n (capped at 128); src tile: 128 or full n."""
    td = n
    for cand in (128, 64, 32, 16, 8):
        if cand < n and n % cand == 0:
            td = cand
            break
    ts = 128 if (n > 128 and n % 128 == 0) else n
    return td, ts


def _block_sparsity(norm_adj, n_dst, td, n_src, ts):
    """Per-dst-tile list of nonzero src-block indices (padded with the last valid one)."""
    blk = jnp.sum(jnp.abs(norm_adj).reshape(n_dst, td, n_src, ts), axis=(1, 3)) > 0
    nnz = jnp.sum(blk, axis=1).astype(jnp.int32)                     # [n_dst]
    max_nnz = max(int(jnp.max(nnz)), 1)
    src_idx = jnp.arange(n_src, dtype=jnp.int32)
    key = jnp.where(blk, src_idx[None, :], n_src + src_idx[None, :])
    order = jnp.argsort(key, axis=1).astype(jnp.int32)[:, :max_nnz]  # nonzero cols first
    last = order[jnp.arange(n_dst), jnp.maximum(nnz - 1, 0)]
    k_idx = jnp.arange(max_nnz, dtype=jnp.int32)[None, :]
    col_ids = jnp.where(k_idx < nnz[:, None], order, last[:, None]).astype(jnp.int32)
    return col_ids, nnz, max_nnz


def gated_conv(norm_adj, col_ids, nnz, max_nnz, gi1, ghd, x_k, pos_ub,
               wi2, w_out, b_out, td, ts, tail=None):
    N, I = x_k.shape
    S = gi1.shape[-1]
    PU = pos_ub.shape[1]
    n_dst = N // td
    fuse_tail = tail is not None
    out_dim = tail[4].shape[1] if fuse_tail else I
    kernel = _make_conv_kernel(S, td, fuse_tail)

    in_specs = [
        pl.BlockSpec((6, td, S), lambda i, k, c, n: (0, i, 0)),        # ghd  (dst)
        pl.BlockSpec((3, ts, S), lambda i, k, c, n: (0, c[i, k], 0)),  # gi1  (src, sparse)
        pl.BlockSpec((td, ts), lambda i, k, c, n: (i, c[i, k])),       # adj block (sparse)
        pl.BlockSpec((td, I), lambda i, k, c, n: (i, 0)),              # x_k  (dst)
        pl.BlockSpec((td, PU), lambda i, k, c, n: (i, 0)),             # pos_ub (dst)
        pl.BlockSpec((S, 3 * S), lambda i, k, c, n: (0, 0)),           # wi2
        pl.BlockSpec((S, I), lambda i, k, c, n: (0, 0)),               # w_out
        pl.BlockSpec((1, I), lambda i, k, c, n: (0, 0)),               # b_out
    ]
    args = [ghd, gi1, norm_adj, x_k, pos_ub, wi2, w_out, b_out]
    if fuse_tail:
        x1, xr, ln_g, ln_b, w2a, w2b, b2 = tail
        in_specs += [
            pl.BlockSpec((td, I), lambda i, k, c, n: (i, 0)),          # x1   (dst)
            pl.BlockSpec((td, I), lambda i, k, c, n: (i, 0)),          # rnn_x nodes (dst)
            pl.BlockSpec((1, I), lambda i, k, c, n: (0, 0)),           # ln gamma
            pl.BlockSpec((1, I), lambda i, k, c, n: (0, 0)),           # ln beta
            pl.BlockSpec((I, out_dim), lambda i, k, c, n: (0, 0)),     # w2 (rnn half)
            pl.BlockSpec((I, out_dim), lambda i, k, c, n: (0, 0)),     # w2 (graph half)
            pl.BlockSpec((1, out_dim), lambda i, k, c, n: (0, 0)),     # b2
        ]
        args += [x1, xr, ln_g, ln_b, w2a, w2b, b2]

    grid_spec = pltpu.PrefetchScalarGridSpec(
        num_scalar_prefetch=2,
        grid=(n_dst, max_nnz),
        in_specs=in_specs,
        out_specs=pl.BlockSpec((td, out_dim), lambda i, k, c, n: (i, 0)),
        scratch_shapes=[pltpu.VMEM((td, S), jnp.float32)],             # agg accumulator
    )
    return pl.pallas_call(
        kernel,
        out_shape=jax.ShapeDtypeStruct((N, out_dim), jnp.float32),
        grid_spec=grid_spec,
        compiler_params=pltpu.CompilerParams(
            dimension_semantics=("parallel", "arbitrary")),
    )(col_ids, nnz, *args)


# ----------------------------- Model wrapper -----------------------------

class GatedGCNContextPallas:
    def __init__(self, inpt_size, output_size, user_embed_size, posemb_size,
                 dropout=0.5, threshold=2, key=None):
        size = inpt_size + user_embed_size + posemb_size
        self.inpt, self.out_size = inpt_size, output_size
        self.uemb, self.pemb, self.size = user_embed_size, posemb_size, size
        self.threshold = threshold
        I = inpt_size

        key = jax.random.PRNGKey(42) if key is None else key
        keys = iter(jax.random.split(key, 32))

        def xavier(shape):
            std = (2.0 / (shape[0] + shape[1])) ** 0.5
            return std * jax.random.normal(next(keys), shape, jnp.float32)

        # shared GRUCell gating kernels (kernel_rnn1/2), stored transposed [in, 3*size]
        self.rnn1_wi = xavier((size, 3 * size)); self.rnn1_wh = xavier((size, 3 * size))
        self.rnn2_wi = xavier((size, 3 * size)); self.rnn2_wh = xavier((size, 3 * size))
        # fused slices: x-dependent rows ([I,9S], one matmul per layer) and the constant
        # pos/ub rows ([P+U,9S]) — folded into the same row-tiled prep matmul (no const9)
        self.w_x9 = jnp.concatenate(
            [self.rnn1_wi[:I], self.rnn1_wh[:I], self.rnn2_wh[:I]], axis=1)   # [I, 9S]
        self.w_pu9 = jnp.concatenate(
            [self.rnn1_wi[I:], self.rnn1_wh[I:], self.rnn2_wh[I:]], axis=1)   # [P+U, 9S]
        self.wi2 = self.rnn2_wi                                               # [S, 3S]
        # per-conv output projections (size -> inpt_size)
        self.conv_w = [xavier((size, I)) for _ in range(3)]
        self.conv_b = [jnp.zeros((1, I), jnp.float32) for _ in range(3)]
        # layer norm (default init: gamma=1, beta=0)
        self.ln_g = jnp.ones((1, I), jnp.float32)
        self.ln_b = jnp.zeros((1, I), jnp.float32)
        # bidirectional GRU: input = inpt + uemb, hidden = inpt; direction-stacked weights
        gin = inpt_size + user_embed_size
        wif, whf = xavier((gin, 3 * I)), xavier((I, 3 * I))
        wib, whb = xavier((gin, 3 * I)), xavier((I, 3 * I))
        self.gru_wi = jnp.stack([wif, wib])                   # [2, gin, 3I]
        self.gru_wh = jnp.stack([whf, whb])                   # [2, I, 3I]
        # biases zeroed (init_weight)
        # linear1 (2I -> I), split per GRU direction so no concat is needed
        w1 = xavier((2 * I, I))
        self.w1_dir = jnp.stack([w1[:I], w1[I:]])             # [2, I, I]
        self.b1 = jnp.zeros((1, I), jnp.float32)
        # linear2 (2I -> out), split into rnn / graph halves for the fused tail
        w2 = xavier((2 * I, output_size))
        self.w2a, self.w2b = w2[:I], w2[I:]
        self.b2 = jnp.zeros((1, output_size), jnp.float32)
        # position embedding table (100 positions)
        self.posemb = 0.1 * jax.random.normal(next(keys), (100, posemb_size), jnp.float32)

    def __call__(self, norm_adj, utter_hidden, ub):
        T, B, _ = utter_hidden.shape
        I, U, S = self.inpt, self.uemb, self.size

        # ---- bidirectional GRU + tanh(linear1) + rnnh, single fused kernel ----
        rnn_in = jnp.concatenate([utter_hidden, ub], axis=-1)            # [T,B,I+U]
        rnn_x, rnnh = bigru_forward(rnn_in, self.gru_wi, self.gru_wh,
                                    self.w1_dir, self.b1)

        if T <= self.threshold:
            return rnn_x, rnnh

        # ---- graph path ----
        N = B * T
        x_nodes = jnp.transpose(rnn_x, (1, 0, 2)).reshape(N, I)          # b-major (PyG)
        pos = self.posemb[jnp.tile(jnp.arange(T), B)]                    # [N, P]
        # NOTE: the reference forward flattens `ub` t-major while node rows are b-major;
        # reproduced verbatim for parity with the original torch code.
        ub_nodes = ub.reshape(T * B, U)
        pos_ub = jnp.concatenate([pos, ub_nodes], axis=1)                # [N, P+U]

        td, ts = _conv_tiles(N)
        n_dst, n_src = N // td, N // ts
        col_ids, nnz, max_nnz = _block_sparsity(norm_adj, n_dst, td, n_src, ts)

        def prep(x_k):
            return conv_prep(x_k, pos_ub, self.w_x9, self.w_pu9, S)

        gi1, ghd = prep(x_nodes)
        x1 = gated_conv(norm_adj, col_ids, nnz, max_nnz, gi1, ghd, x_nodes, pos_ub,
                        self.wi2, self.conv_w[0], self.conv_b[0], td, ts)
        gi1, ghd = prep(x1)
        x2 = gated_conv(norm_adj, col_ids, nnz, max_nnz, gi1, ghd, x1, pos_ub,
                        self.wi2, self.conv_w[1], self.conv_b[1], td, ts)
        gi1, ghd = prep(x2)
        # conv3 with the tail fused into its finalize (x3 never hits HBM);
        # dropout(p=0.5) is inference identity.
        out_nodes = gated_conv(norm_adj, col_ids, nnz, max_nnz, gi1, ghd, x2, pos_ub,
                               self.wi2, self.conv_w[2], self.conv_b[2], td, ts,
                               tail=(x1, x_nodes, self.ln_g, self.ln_b,
                                     self.w2a, self.w2b, self.b2))
        out = jnp.transpose(out_nodes.reshape(B, T, self.out_size), (1, 0, 2))
        return out, rnnh


def build_norm_adj(batch_size, turn_size, window=2):
    """Synthetic per-dialogue graph (edges between turns within `window`), batched
    block-diagonally, with self-loops and symmetric GCN normalization."""
    idx = jnp.arange(turn_size)
    a = ((jnp.abs(idx[:, None] - idx[None, :]) <= window) &
         (idx[:, None] != idx[None, :])).astype(jnp.float32)
    a_full = jnp.kron(jnp.eye(batch_size, dtype=jnp.float32), a)
    a_sl = a_full + jnp.eye(batch_size * turn_size, dtype=jnp.float32)
    deg = jnp.sum(a_sl, axis=1)
    dinv = jax.lax.rsqrt(deg)
    return dinv[:, None] * a_sl * dinv[None, :]


if __name__ == "__main__":
    # T=24, B=16 -> N=384: exercises the block-sparse skip path (3x3 blocks, variable
    # nnz per dst tile incl. padded steps) and the chunked pairwise gate loop.
    T, B = 24, 16
    INPT, OUT, UEMB, PEMB = 32, 32, 16, 16

    key = jax.random.PRNGKey(0)
    k_h, k_u, k_p = jax.random.split(key, 3)
    utter_hidden = jax.random.normal(k_h, (T, B, INPT), jnp.float32)
    ub = jax.random.normal(k_u, (T, B, UEMB), jnp.float32)

    model = GatedGCNContextPallas(INPT, OUT, UEMB, PEMB, threshold=2, key=k_p)
    norm_adj = build_norm_adj(B, T)

    out, rnnh = model(norm_adj, utter_hidden, ub)
    jax.block_until_ready((out, rnnh))
    assert out.shape == (T, B, OUT) and rnnh.shape == (B, INPT)
    assert bool(jnp.all(jnp.isfinite(out))) and bool(jnp.all(jnp.isfinite(rnnh)))
    print("KERNEL_OK")
</pallas_src>

<mosaic_0001>
module attributes {stable_mosaic.version = 11 : i64} {
  func.func @bigru_kernel(%arg0: memref<24x16x48xf32, #tpu.memory_space<vmem>>, %arg1: memref<2x48x96xf32, #tpu.memory_space<vmem>>, %arg2: memref<2x32x96xf32, #tpu.memory_space<vmem>>, %arg3: memref<2x32x32xf32, #tpu.memory_space<vmem>>, %arg4: memref<1x32xf32, #tpu.memory_space<vmem>>, %arg5: memref<24x16x32xf32, #tpu.memory_space<vmem>>, %arg6: memref<16x32xf32, #tpu.memory_space<vmem>>, %arg7: memref<24x16x96xf32, #tpu.memory_space<vmem>>, %arg8: memref<24x16x96xf32, #tpu.memory_space<vmem>>, %arg9: memref<24x16x32xf32, #tpu.memory_space<vmem>>, %arg10: memref<24x16x32xf32, #tpu.memory_space<vmem>>) attributes {dimension_semantics = [], scalar_prefetch = 0 : i64, scratch_operands = 4 : i64, tpu.core_type = #tpu.core_type<tc>} {
    %c0 = arith.constant 0 : index
    %c0_0 = arith.constant 0 : index
    %c0_1 = arith.constant 0 : index
    %0 = vector.load %arg0[%c0, %c0_0, %c0_1] : memref<24x16x48xf32, #tpu.memory_space<vmem>>, vector<24x16x48xf32>
    %1 = vector.shape_cast %0 : vector<24x16x48xf32> to vector<384x48xf32>
    %c0_2 = arith.constant 0 : index
    %c0_3 = arith.constant 0 : index
    %c0_4 = arith.constant 0 : index
    %2 = vector.load %arg1[%c0_2, %c0_3, %c0_4] : memref<2x48x96xf32, #tpu.memory_space<vmem>>, vector<1x48x96xf32>
    %3 = vector.shape_cast %2 : vector<1x48x96xf32> to vector<48x96xf32>
    %cst = arith.constant dense<0.000000e+00> : vector<384x96xf32>
    %4 = tpu.matmul %1, %3, %cst {dimension_numbers = #tpu.dot_dimension_numbers<[1], [0], [0], [1], [0, 0, 1, 1], [], []>} : vector<384x48xf32>, vector<48x96xf32>, vector<384x96xf32> -> vector<384x96xf32>
    %5 = vector.shape_cast %4 : vector<384x96xf32> to vector<24x16x96xf32>
    %c0_5 = arith.constant 0 : index
    %c0_6 = arith.constant 0 : index
    %c0_7 = arith.constant 0 : index
    %6 = vector.load %arg7[%c0_5, %c0_6, %c0_7] : memref<24x16x96xf32, #tpu.memory_space<vmem>>, vector<24x16x96xf32>
    tpu.vector_store %arg7[%c0_5, %c0_6, %c0_7], %5 {strides = array<i32>} : memref<24x16x96xf32, #tpu.memory_space<vmem>>, vector<24x16x96xf32>,
    %c1 = arith.constant 1 : index
    %c0_8 = arith.constant 0 : index
    %c0_9 = arith.constant 0 : index
    %7 = vector.load %arg1[%c1, %c0_8, %c0_9] : memref<2x48x96xf32, #tpu.memory_space<vmem>>, vector<1x48x96xf32>
    %8 = vector.shape_cast %7 : vector<1x48x96xf32> to vector<48x96xf32>
    %cst_10 = arith.constant dense<0.000000e+00> : vector<384x96xf32>
    %9 = tpu.matmul %1, %8, %cst_10 {dimension_numbers = #tpu.dot_dimension_numbers<[1], [0], [0], [1], [0, 0, 1, 1], [], []>} : vector<384x48xf32>, vector<48x96xf32>, vector<384x96xf32> -> vector<384x96xf32>
    %10 = vector.shape_cast %9 : vector<384x96xf32> to vector<24x16x96xf32>
    %c0_11 = arith.constant 0 : index
    %c0_12 = arith.constant 0 : index
    %c0_13 = arith.constant 0 : index
    %11 = vector.load %arg8[%c0_11, %c0_12, %c0_13] : memref<24x16x96xf32, #tpu.memory_space<vmem>>, vector<24x16x96xf32>
    tpu.vector_store %arg8[%c0_11, %c0_12, %c0_13], %10 {strides = array<i32>} : memref<24x16x96xf32, #tpu.memory_space<vmem>>, vector<24x16x96xf32>,
    %c0_14 = arith.constant 0 : index
    %c0_15 = arith.constant 0 : index
    %c0_16 = arith.constant 0 : index
    %12 = vector.load %arg2[%c0_14, %c0_15, %c0_16] : memref<2x32x96xf32, #tpu.memory_space<vmem>>, vector<1x32x96xf32>
    %13 = vector.shape_cast %12 : vector<1x32x96xf32> to vector<32x96xf32>
    %c1_17 = arith.constant 1 : index
    %c0_18 = arith.constant 0 : index
    %c0_19 = arith.constant 0 : index
    %14 = vector.load %arg2[%c1_17, %c0_18, %c0_19] : memref<2x32x96xf32, #tpu.memory_space<vmem>>, vector<1x32x96xf32>
    %15 = vector.shape_cast %14 : vector<1x32x96xf32> to vector<32x96xf32>
    %cst_20 = arith.constant 0.000000e+00 : f32
    %16 = vector.broadcast %cst_20 : f32 to vector<16x32xf32>
    %c0_i32 = arith.constant 0 : i32
    %c24_i32 = arith.constant 24 : i32
    %17 = arith.addi %c0_i32, %c24_i32 : i32
    %c1_i32 = arith.constant 1 : i32
    %18:2 = scf.for %arg11 = %c0_i32 to %17 step %c1_i32 iter_args(%arg12 = %16, %arg13 = %16) -> (vector<16x32xf32>, vector<16x32xf32>)  : i32 {
      %c23_i32 = arith.constant 23 : i32
      %39 = arith.subi %c23_i32, %arg11 : i32
      %40 = arith.index_cast %arg11 : i32 to index
      %c0_43 = arith.constant 0 : index
      %c0_44 = arith.constant 0 : index
      %41 = vector.load %arg7[%40, %c0_43, %c0_44] : memref<24x16x96xf32, #tpu.memory_space<vmem>>, vector<1x16x96xf32>
      %42 = vector.shape_cast %41 : vector<1x16x96xf32> to vector<16x96xf32>
      %43 = arith.index_cast %39 : i32 to index
      %c0_45 = arith.constant 0 : index
      %c0_46 = arith.constant 0 : index
      %44 = vector.load %arg8[%43, %c0_45, %c0_46] : memref<24x16x96xf32, #tpu.memory_space<vmem>>, vector<1x16x96xf32>
      %45 = vector.shape_cast %44 : vector<1x16x96xf32> to vector<16x96xf32>
      %cst_47 = arith.constant dense<0.000000e+00> : vector<16x96xf32>
      %46 = tpu.matmul %arg12, %13, %cst_47 {dimension_numbers = #tpu.dot_dimension_numbers<[1], [0], [0], [1], [0, 0, 1, 1], [], []>} : vector<16x32xf32>, vector<32x96xf32>, vector<16x96xf32> -> vector<16x96xf32>
      %cst_48 = arith.constant dense<0.000000e+00> : vector<16x96xf32>
      %47 = tpu.matmul %arg13, %15, %cst_48 {dimension_numbers = #tpu.dot_dimension_numbers<[1], [0], [0], [1], [0, 0, 1, 1], [], []>} : vector<16x32xf32>, vector<32x96xf32>, vector<16x96xf32> -> vector<16x96xf32>
      %48 = vector.extract_strided_slice %42 {offsets = [0, 0], sizes = [16, 32], strides = [1, 1]} : vector<16x96xf32> to vector<16x32xf32>
      %49 = vector.extract_strided_slice %46 {offsets = [0, 0], sizes = [16, 32], strides = [1, 1]} : vector<16x96xf32> to vector<16x32xf32>
      %50 = arith.addf %48, %49 : vector<16x32xf32>
      %51 = arith.negf %50 : vector<16x32xf32>
      %52 = math.exp %51 : vector<16x32xf32>
      %cst_49 = arith.constant 1.000000e+00 : f32
      %53 = vector.broadcast %cst_49 : f32 to vector<16x32xf32>
      %54 = arith.addf %53, %52 : vector<16x32xf32>
      %55 = arith.divf %53, %54 : vector<16x32xf32>
      %56 = vector.extract_strided_slice %42 {offsets = [0, 32], sizes = [16, 32], strides = [1, 1]} : vector<16x96xf32> to vector<16x32xf32>
      %57 = vector.extract_strided_slice %46 {offsets = [0, 32], sizes = [16, 32], strides = [1, 1]} : vector<16x96xf32> to vector<16x32xf32>
      %58 = arith.addf %56, %57 : vector<16x32xf32>
      %59 = arith.negf %58 : vector<16x32xf32>
      %60 = math.exp %59 : vector<16x32xf32>
      %cst_50 = arith.constant 1.000000e+00 : f32
      %61 = vector.broadcast %cst_50 : f32 to vector<16x32xf32>
      %62 = arith.addf %61, %60 : vector<16x32xf32>
      %63 = arith.divf %61, %62 : vector<16x32xf32>
      %64 = vector.extract_strided_slice %42 {offsets = [0, 64], sizes = [16, 32], strides = [1, 1]} : vector<16x96xf32> to vector<16x32xf32>
      %65 = vector.extract_strided_slice %46 {offsets = [0, 64], sizes = [16, 32], strides = [1, 1]} : vector<16x96xf32> to vector<16x32xf32>
      %66 = arith.mulf %55, %65 : vector<16x32xf32>
      %67 = arith.addf %64, %66 : vector<16x32xf32>
      %68 = math.tanh %67 : vector<16x32xf32>
      %cst_51 = arith.constant 1.000000e+00 : f32
      %69 = vector.broadcast %cst_51 : f32 to vector<16x32xf32>
      %70 = arith.subf %69, %63 : vector<16x32xf32>
      %71 = arith.mulf %70, %68 : vector<16x32xf32>
      %72 = arith.mulf %63, %arg12 : vector<16x32xf32>
      %73 = arith.addf %71, %72 : vector<16x32xf32>
      %74 = vector.extract_strided_slice %45 {offsets = [0, 0], sizes = [16, 32], strides = [1, 1]} : vector<16x96xf32> to vector<16x32xf32>
      %75 = vector.extract_strided_slice %47 {offsets = [0, 0], sizes = [16, 32], strides = [1, 1]} : vector<16x96xf32> to vector<16x32xf32>
      %76 = arith.addf %74, %75 : vector<16x32xf32>
      %77 = arith.negf %76 : vector<16x32xf32>
      %78 = math.exp %77 : vector<16x32xf32>
      %cst_52 = arith.constant 1.000000e+00 : f32
      %79 = vector.broadcast %cst_52 : f32 to vector<16x32xf32>
      %80 = arith.addf %79, %78 : vector<16x32xf32>
      %81 = arith.divf %79, %80 : vector<16x32xf32>
      %82 = vector.extract_strided_slice %45 {offsets = [0, 32], sizes = [16, 32], strides = [1, 1]} : vector<16x96xf32> to vector<16x32xf32>
      %83 = vector.extract_strided_slice %47 {offsets = [0, 32], sizes = [16, 32], strides = [1, 1]} : vector<16x96xf32> to vector<16x32xf32>
      %84 = arith.addf %82, %83 : vector<16x32xf32>
      %85 = arith.negf %84 : vector<16x32xf32>
      %86 = math.exp %85 : vector<16x32xf32>
      %cst_53 = arith.constant 1.000000e+00 : f32
      %87 = vector.broadcast %cst_53 : f32 to vector<16x32xf32>
      %88 = arith.addf %87, %86 : vector<16x32xf32>
      %89 = arith.divf %87, %88 : vector<16x32xf32>
      %90 = vector.extract_strided_slice %45 {offsets = [0, 64], sizes = [16, 32], strides = [1, 1]} : vector<16x96xf32> to vector<16x32xf32>
      %91 = vector.extract_strided_slice %47 {offsets = [0, 64], sizes = [16, 32], strides = [1, 1]} : vector<16x96xf32> to vector<16x32xf32>
      %92 = arith.mulf %81, %91 : vector<16x32xf32>
      %93 = arith.addf %90, %92 : vector<16x32xf32>
      %94 = math.tanh %93 : vector<16x32xf32>
      %cst_54 = arith.constant 1.000000e+00 : f32
      %95 = vector.broadcast %cst_54 : f32 to vector<16x32xf32>
      %96 = arith.subf %95, %89 : vector<16x32xf32>
      %97 = arith.mulf %96, %94 : vector<16x32xf32>
      %98 = arith.mulf %89, %arg13 : vector<16x32xf32>
      %99 = arith.addf %97, %98 : vector<16x32xf32>
      %100 = arith.index_cast %arg11 : i32 to index
      %c0_55 = arith.constant 0 : index
      %c0_56 = arith.constant 0 : index
      %101 = vector.load %arg9[%100, %c0_55, %c0_56] : memref<24x16x32xf32, #tpu.memory_space<vmem>>, vector<1x16x32xf32>
      %102 = vector.shape_cast %101 : vector<1x16x32xf32> to vector<16x32xf32>
      %103 = vector.shape_cast %73 : vector<16x32xf32> to vector<1x16x32xf32>
      tpu.vector_store %arg9[%100, %c0_55, %c0_56], %103 {strides = array<i32>} : memref<24x16x32xf32, #tpu.memory_space<vmem>>, vector<1x16x32xf32>,
      %104 = arith.index_cast %39 : i32 to index
      %c0_57 = arith.constant 0 : index
      %c0_58 = arith.constant 0 : index
      %105 = vector.load %arg10[%104, %c0_57, %c0_58] : memref<24x16x32xf32, #tpu.memory_space<vmem>>, vector<1x16x32xf32>
      %106 = vector.shape_cast %105 : vector<1x16x32xf32> to vector<16x32xf32>
      %107 = vector.shape_cast %99 : vector<16x32xf32> to vector<1x16x32xf32>
      tpu.vector_store %arg10[%104, %c0_57, %c0_58], %107 {strides = array<i32>} : memref<24x16x32xf32, #tpu.memory_space<vmem>>, vector<1x16x32xf32>,
      scf.yield %73, %99 : vector<16x32xf32>, vector<16x32xf32>
    }
    %c24_i32_21 = arith.constant 24 : i32
    %19 = arith.addf %18#0, %18#1 : vector<16x32xf32>
    %20 = math.tanh %19 : vector<16x32xf32>
    %c0_22 = arith.constant 0 : index
    %c0_23 = arith.constant 0 : index
    %21 = vector.load %arg6[%c0_22, %c0_23] : memref<16x32xf32, #tpu.memory_space<vmem>>, vector<16x32xf32>
    tpu.vector_store %arg6[%c0_22, %c0_23], %20 {strides = array<i32>} : memref<16x32xf32, #tpu.memory_space<vmem>>, vector<16x32xf32>,
    %c0_24 = arith.constant 0 : index
    %c0_25 = arith.constant 0 : index
    %c0_26 = arith.constant 0 : index
    %22 = vector.load %arg9[%c0_24, %c0_25, %c0_26] : memref<24x16x32xf32, #tpu.memory_space<vmem>>, vector<24x16x32xf32>
    %23 = vector.shape_cast %22 : vector<24x16x32xf32> to vector<384x32xf32>
    %c0_27 = arith.constant 0 : index
    %c0_28 = arith.constant 0 : index
    %c0_29 = arith.constant 0 : index
    %24 = vector.load %arg3[%c0_27, %c0_28, %c0_29] : memref<2x32x32xf32, #tpu.memory_space<vmem>>, vector<1x32x32xf32>
    %25 = vector.shape_cast %24 : vector<1x32x32xf32> to vector<32x32xf32>
    %cst_30 = arith.constant dense<0.000000e+00> : vector<384x32xf32>
    %26 = tpu.matmul %23, %25, %cst_30 {dimension_numbers = #tpu.dot_dimension_numbers<[1], [0], [0], [1], [0, 0, 1, 1], [], []>} : vector<384x32xf32>, vector<32x32xf32>, vector<384x32xf32> -> vector<384x32xf32>
    %c0_31 = arith.constant 0 : index
    %c0_32 = arith.constant 0 : index
    %c0_33 = arith.constant 0 : index
    %27 = vector.load %arg10[%c0_31, %c0_32, %c0_33] : memref<24x16x32xf32, #tpu.memory_space<vmem>>, vector<24x16x32xf32>
    %28 = vector.shape_cast %27 : vector<24x16x32xf32> to vector<384x32xf32>
    %c1_34 = arith.constant 1 : index
    %c0_35 = arith.constant 0 : index
    %c0_36 = arith.constant 0 : index
    %29 = vector.load %arg3[%c1_34, %c0_35, %c0_36] : memref<2x32x32xf32, #tpu.memory_space<vmem>>, vector<1x32x32xf32>
    %30 = vector.shape_cast %29 : vector<1x32x32xf32> to vector<32x32xf32>
    %cst_37 = arith.constant dense<0.000000e+00> : vector<384x32xf32>
    %31 = tpu.matmul %28, %30, %cst_37 {dimension_numbers = #tpu.dot_dimension_numbers<[1], [0], [0], [1], [0, 0, 1, 1], [], []>} : vector<384x32xf32>, vector<32x32xf32>, vector<384x32xf32> -> vector<384x32xf32>
    %32 = arith.addf %26, %31 : vector<384x32xf32>
    %c0_38 = arith.constant 0 : index
    %c0_39 = arith.constant 0 : index
    %33 = vector.load %arg4[%c0_38, %c0_39] : memref<1x32xf32, #tpu.memory_space<vmem>>, vector<1x32xf32>
    %34 = vector.broadcast %33 : vector<1x32xf32> to vector<384x32xf32>
    %35 = arith.addf %32, %34 : vector<384x32xf32>
    %36 = math.tanh %35 : vector<384x32xf32>
    %37 = vector.shape_cast %36 : vector<384x32xf32> to vector<24x16x32xf32>
    %c0_40 = arith.constant 0 : index
    %c0_41 = arith.constant 0 : index
    %c0_42 = arith.constant 0 : index
    %38 = vector.load %arg5[%c0_40, %c0_41, %c0_42] : memref<24x16x32xf32, #tpu.memory_space<vmem>>, vector<24x16x32xf32>
    tpu.vector_store %arg5[%c0_40, %c0_41, %c0_42], %37 {strides = array<i32>} : memref<24x16x32xf32, #tpu.memory_space<vmem>>, vector<24x16x32xf32>,
    return
  }
}

</mosaic_0001>

<llo_original>
// kernel: tpu_custom_call.1
$region0: #{tpu_custom_call.1}
  #allocation0 [shape = 'u32[]', space=smem, size = 0x4, offset = 0x4, fixed_abs, tag = 'smem constant byte address 0x4 - core index']
  #allocation1 [shape = 'u32[72,128]{1,0:T(1,128)}', space=vmem, size = 0x9000, scoped, tag = 'internal scratch']
  #allocation2 [shape = 'f32[24,16,96]{2,1,0:T(8,128)}', space=vmem, size = 0x30000, scoped, tag = 'scratch operand']
  #allocation3 [shape = 'f32[24,16,96]{2,1,0:T(8,128)}', space=vmem, size = 0x30000, scoped, tag = 'scratch operand']
  #allocation4 [shape = 'f32[24,16,32]{2,1,0:T(8,128)}', space=vmem, size = 0x30000, scoped, tag = 'scratch operand']
  #allocation5 [shape = 'f32[24,16,32]{2,1,0:T(8,128)}', space=vmem, size = 0x30000, scoped, tag = 'scratch operand']
  %s0 = inlined_call_operand.hbm [shape: f32[24,16,48], index: 0, kind: input, shape index: {}]
  %s1 = inlined_call_operand.hbm [shape: f32[2,48,96], index: 1, kind: input, shape index: {}]
  %s2 = inlined_call_operand.hbm [shape: f32[2,32,96], index: 2, kind: input, shape index: {}]
  %s3 = inlined_call_operand.hbm [shape: f32[2,32,32], index: 3, kind: input, shape index: {}]
  %s4 = inlined_call_operand.vmem [shape: f32[1,32], index: 4, kind: input, shape index: {}]
  %s5 = inlined_call_operand.hbm [shape: f32[24,16,32], index: 5, kind: output, shape index: {0}]
  %s6 = inlined_call_operand.hbm [shape: f32[16,32], index: 6, kind: output, shape index: {1}]
  %7 = xla_tuple %s5, %s6
  %s8 = sld [smem:[#allocation0]]
  $region61: #{tpu_custom_call.1} parent=0
    _
  %s10 = ssub.s32 1, %s8
  %s11 = scalar_select 0, %s10, %s8
  $region1: #{tpu_custom_call.1} parent=0
    #allocation6 [shape = 'u8[196608]{0}', space=vmem, size = 0x30000, scoped, tag = 'input window, operand 0, single buffered']
    #allocation7 [shape = 's32[1]{0}', space=sflag, size = 0x4, scoped, tag = 'scoped memory for tpu_custom_call.1']
    #allocation8 [shape = 's32[1]{0}', space=sflag, size = 0x4, scoped, tag = 'scoped memory for tpu_custom_call.1']
    #allocation9 [shape = 'u8[49152]{0}', space=vmem, size = 0xc000, scoped, tag = 'input window, operand 1, single buffered']
    #allocation10 [shape = 's32[1]{0}', space=sflag, size = 0x4, scoped, tag = 'scoped memory for tpu_custom_call.1']
    #allocation11 [shape = 'u8[32768]{0}', space=vmem, size = 0x8000, scoped, tag = 'input window, operand 2, single buffered']
    #allocation12 [shape = 'u8[32768]{0}', space=vmem, size = 0x8000, scoped, tag = 'input window, operand 3, single buffered']
    #allocation13 [shape = 's32[1]{0}', space=sflag, size = 0x4, scoped, tag = 'scoped memory for tpu_custom_call.1']
    #allocation14 [shape = 'u8[196608]{0}', space=vmem, size = 0x30000, scoped, tag = 'output window, operand 0, single buffered']
    #allocation15 [shape = 'u8[8192]{0}', space=vmem, size = 0x2000, scoped, tag = 'output window, operand 1, single buffered']
    #allocation16 [shape = 's32[1]{0}', space=sflag, size = 0x4, scoped, tag = 'scoped memory for tpu_custom_call.1']
    %12 = vsyncpa [#allocation7], 0
    %13 = vsyncpa [#allocation10], 0
    %14 = vsyncpa [#allocation13], 0
    %15 = vsyncpa [#allocation8], 0
    %16 = vsyncpa [#allocation16], 0
    // Predicated region
    $region2: #{tpu_custom_call.1} parent=1 // pred_check
      _
    $region3: #{tpu_custom_call.1} parent=1 // pred_check_branch
      %18 = sbr.rel (0) target = $region5
    $region4: #{tpu_custom_call.1} parent=1 // pred_region
      %20 = vsyncadd [#allocation7], 0
      %s21 = sshll.u32 %s0, 4
      %s22 = int_to_ptr.hbm [resolvable:$true] %s21
      %s23 = sshll.u32 [#allocation6], 4
      %s24 = int_to_ptr.vmem [resolvable:$true] %s23
      %29 = dma.hbm_to_vmem [thread:$0]  %s22, 6144, %s24, [#allocation7], 128, 128, 8
    $region5: #{tpu_custom_call.1} parent=1 // pred_fallthru
      _
    // Predicated region
    $region6: #{tpu_custom_call.1} parent=1 // pred_check
      _
    $region7: #{tpu_custom_call.1} parent=1 // pred_check_branch
      %31 = sbr.rel (0) target = $region9
    $region8: #{tpu_custom_call.1} parent=1 // pred_region
      %33 = vsyncadd [#allocation10], 0
      %s34 = sshll.u32 %s1, 4
      %s35 = int_to_ptr.hbm [resolvable:$true] %s34
      %s36 = sshll.u32 [#allocation9], 4
      %s37 = int_to_ptr.vmem [resolvable:$true] %s36
      %42 = dma.hbm_to_vmem [thread:$0]  %s35, 1536, %s37, [#allocation10], 128, 128, 8
    $region9: #{tpu_custom_call.1} parent=1 // pred_fallthru
      _
    // Predicated region
    $region10: #{tpu_custom_call.1} parent=1 // pred_check
      _
    $region11: #{tpu_custom_call.1} parent=1 // pred_check_branch
      %44 = sbr.rel (0) target = $region13
    $region12: #{tpu_custom_call.1} parent=1 // pred_region
      %46 = vsyncadd [#allocation10], 0
      %s47 = sshll.u32 %s2, 4
      %s48 = int_to_ptr.hbm [resolvable:$true] %s47
      %s49 = sshll.u32 [#allocation11], 4
      %s50 = int_to_ptr.vmem [resolvable:$true] %s49
      %55 = dma.hbm_to_vmem [thread:$0]  %s48, 1024, %s50, [#allocation10], 128, 128, 8
    $region13: #{tpu_custom_call.1} parent=1 // pred_fallthru
      _
    // Predicated region
    $region14: #{tpu_custom_call.1} parent=1 // pred_check
      _
    $region15: #{tpu_custom_call.1} parent=1 // pred_check_branch
      %57 = sbr.rel (0) target = $region17
    $region16: #{tpu_custom_call.1} parent=1 // pred_region
      %59 = vsyncadd [#allocation13], 0
      %s60 = sshll.u32 %s3, 4
      %s61 = int_to_ptr.hbm [resolvable:$true] %s60
      %s62 = sshll.u32 [#allocation12], 4
      %s63 = int_to_ptr.vmem [resolvable:$true] %s62
      %68 = dma.hbm_to_vmem [thread:$0]  %s61, 1024, %s63, [#allocation13], 128, 128, 8
    $region17: #{tpu_custom_call.1} parent=1 // pred_fallthru
      _
    // Predicated region
    $region18: #{tpu_custom_call.1} parent=1 // pred_check
      _
    $region19: #{tpu_custom_call.1} parent=1 // pred_check_branch
      %70 = sbr.rel (0) target = $region21
    $region20: #{tpu_custom_call.1} parent=1 // pred_region
      _
    $region21: #{tpu_custom_call.1} parent=1 // pred_fallthru
      _
    // Predicated region
    $region22: #{tpu_custom_call.1} parent=1 // pred_check
      _
    $region23: #{tpu_custom_call.1} parent=1 // pred_check_branch
      %72 = sbr.rel (0) target = $region25
    $region24: #{tpu_custom_call.1} parent=1 // pred_region
      %74 = dma.done [#allocation7], 6144
    $region25: #{tpu_custom_call.1} parent=1 // pred_fallthru
      _
    // Predicated region
    $region26: #{tpu_custom_call.1} parent=1 // pred_check
      _
    $region27: #{tpu_custom_call.1} parent=1 // pred_check_branch
      %76 = sbr.rel (0) target = $region29
    $region28: #{tpu_custom_call.1} parent=1 // pred_region
      %78 = dma.done [#allocation10], 1536
    $region29: #{tpu_custom_call.1} parent=1 // pred_fallthru
      _
    // Predicated region
    $region30: #{tpu_custom_call.1} parent=1 // pred_check
      _
    $region31: #{tpu_custom_call.1} parent=1 // pred_check_branch
      %80 = sbr.rel (0) target = $region33
    $region32: #{tpu_custom_call.1} parent=1 // pred_region
      %82 = dma.done [#allocation10], 1024
    $region33: #{tpu_custom_call.1} parent=1 // pred_fallthru
      _
    // Predicated region
    $region34: #{tpu_custom_call.1} parent=1 // pred_check
      _
    $region35: #{tpu_custom_call.1} parent=1 // pred_check_branch
      %84 = sbr.rel (0) target = $region37
    $region36: #{tpu_custom_call.1} parent=1 // pred_region
      %86 = dma.done [#allocation13], 1024
    $region37: #{tpu_custom_call.1} parent=1 // pred_fallthru
      _
    %v87 = vld [vmem:[#allocation6] sm:$0xff]
    %v88 = vld [vmem:[#allocation6 + $0x8] sm:$0xff]
    %v89 = vld [vmem:[#allocation6 + $0x10] sm:$0xff]
    %v90 = vld [vmem:[#allocation6 + $0x18] sm:$0xff]
    %v91 = vld [vmem:[#allocation6 + $0x20] sm:$0xff]
    %v92 = vld [vmem:[#allocation6 + $0x28] sm:$0xff]
    %v93 = vld [vmem:[#allocation6 + $0x30] sm:$0xff]
    %v94 = vld [vmem:[#allocation6 + $0x38] sm:$0xff]
    %v95 = vld [vmem:[#allocation6 + $0x40] sm:$0xff]
    %v96 = vld [vmem:[#allocation6 + $0x48] sm:$0xff]
    %v97 = vld [vmem:[#allocation6 + $0x50] sm:$0xff]
    %v98 = vld [vmem:[#allocation6 + $0x58] sm:$0xff]
    %v99 = vld [vmem:[#allocation6 + $0x60] sm:$0xff]
    %v100 = vld [vmem:[#allocation6 + $0x68] sm:$0xff]
    %v101 = vld [vmem:[#allocation6 + $0x70] sm:$0xff]
    %v102 = vld [vmem:[#allocation6 + $0x78] sm:$0xff]
    %v103 = vld [vmem:[#allocation6 + $0x80] sm:$0xff]
    %v104 = vld [vmem:[#allocation6 + $0x88] sm:$0xff]
    %v105 = vld [vmem:[#allocation6 + $0x90] sm:$0xff]
    %v106 = vld [vmem:[#allocation6 + $0x98] sm:$0xff]
    %v107 = vld [vmem:[#allocation6 + $0xa0] sm:$0xff]
    %v108 = vld [vmem:[#allocation6 + $0xa8] sm:$0xff]
    %v109 = vld [vmem:[#allocation6 + $0xb0] sm:$0xff]
    %v110 = vld [vmem:[#allocation6 + $0xb8] sm:$0xff]
    %v111 = vld [vmem:[#allocation6 + $0xc0] sm:$0xff]
    %v112 = vld [vmem:[#allocation6 + $0xc8] sm:$0xff]
    %v113 = vld [vmem:[#allocation6 + $0xd0] sm:$0xff]
    %v114 = vld [vmem:[#allocation6 + $0xd8] sm:$0xff]
    %v115 = vld [vmem:[#allocation6 + $0xe0] sm:$0xff]
    %v116 = vld [vmem:[#allocation6 + $0xe8] sm:$0xff]
    %v117 = vld [vmem:[#allocation6 + $0xf0] sm:$0xff]
    %v118 = vld [vmem:[#allocation6 + $0xf8] sm:$0xff]
    %v119 = vld [vmem:[#allocation6 + $0x100] sm:$0xff]
    %v120 = vld [vmem:[#allocation6 + $0x108] sm:$0xff]
    %v121 = vld [vmem:[#allocation6 + $0x110] sm:$0xff]
    %v122 = vld [vmem:[#allocation6 + $0x118] sm:$0xff]
    %v123 = vld [vmem:[#allocation6 + $0x120] sm:$0xff]
    %v124 = vld [vmem:[#allocation6 + $0x128] sm:$0xff]
    %v125 = vld [vmem:[#allocation6 + $0x130] sm:$0xff]
    %v126 = vld [vmem:[#allocation6 + $0x138] sm:$0xff]
    %v127 = vld [vmem:[#allocation6 + $0x140] sm:$0xff]
    %v128 = vld [vmem:[#allocation6 + $0x148] sm:$0xff]
    %v129 = vld [vmem:[#allocation6 + $0x150] sm:$0xff]
    %v130 = vld [vmem:[#allocation6 + $0x158] sm:$0xff]
    %v131 = vld [vmem:[#allocation6 + $0x160] sm:$0xff]
    %v132 = vld [vmem:[#allocation6 + $0x168] sm:$0xff]
    %v133 = vld [vmem:[#allocation6 + $0x170] sm:$0xff]
    %v134 = vld [vmem:[#allocation6 + $0x178] sm:$0xff]
    %v135 = vld [vmem:[#allocation9] sm:$0xff]
    %v136 = vld [vmem:[#allocation9 + $0x8] sm:$0xff]
    %v137 = vld [vmem:[#allocation9 + $0x10] sm:$0xff]
    %v138 = vld [vmem:[#allocation9 + $0x18] sm:$0xff]
    %v139 = vld [vmem:[#allocation9 + $0x20] sm:$0xff]
    %v140 = vld [vmem:[#allocation9 + $0x28] sm:$0xff]
    %vm141 = vcmask 392192
    %v143 = vsel %vm141, %v87, 0
    %v146 = vsel %vm141, %v88, 0
    %v149 = vsel %vm141, %v89, 0
    %v152 = vsel %vm141, %v90, 0
    %v155 = vsel %vm141, %v91, 0
    %v158 = vsel %vm141, %v92, 0
    %v161 = vsel %vm141, %v93, 0
    %v164 = vsel %vm141, %v94, 0
    %v167 = vsel %vm141, %v95, 0
    %v170 = vsel %vm141, %v96, 0
    %v173 = vsel %vm141, %v97, 0
    %v176 = vsel %vm141, %v98, 0
    %v179 = vsel %vm141, %v99, 0
    %v182 = vsel %vm141, %v100, 0
    %v185 = vsel %vm141, %v101, 0
    %v188 = vsel %vm141, %v102, 0
    %v191 = vsel %vm141, %v103, 0
    %v194 = vsel %vm141, %v104, 0
    %v197 = vsel %vm141, %v105, 0
    %v200 = vsel %vm141, %v106, 0
    %v203 = vsel %vm141, %v107, 0
    %v206 = vsel %vm141, %v108, 0
    %v209 = vsel %vm141, %v109, 0
    %v212 = vsel %vm141, %v110, 0
    %v215 = vsel %vm141, %v111, 0
    %v218 = vsel %vm141, %v112, 0
    %v221 = vsel %vm141, %v113, 0
    %v224 = vsel %vm141, %v114, 0
    %v227 = vsel %vm141, %v115, 0
    %v230 = vsel %vm141, %v116, 0
    %v233 = vsel %vm141, %v117, 0
    %v236 = vsel %vm141, %v118, 0
    %v239 = vsel %vm141, %v119, 0
    %v242 = vsel %vm141, %v120, 0
    %v245 = vsel %vm141, %v121, 0
    %v248 = vsel %vm141, %v122, 0
    %v251 = vsel %vm141, %v123, 0
    %v254 = vsel %vm141, %v124, 0
    %v257 = vsel %vm141, %v125, 0
    %v260 = vsel %vm141, %v126, 0
    %v263 = vsel %vm141, %v127, 0
    %v266 = vsel %vm141, %v128, 0
    %v269 = vsel %vm141, %v129, 0
    %v272 = vsel %vm141, %v130, 0
    %v275 = vsel %vm141, %v131, 0
    %v278 = vsel %vm141, %v132, 0
    %v281 = vsel %vm141, %v133, 0
    %v284 = vsel %vm141, %v134, 0
    %286 = vmatpush.msra.mxu0 0.0
    %287 = vmatpush.msra.mxu0 0.0
    %288 = vmatpush.msra.mxu0 0.0
    %289 = vmatpush.msra.mxu0 0.0
    %290 = vmatpush.msra.mxu0 0.0
    %291 = vmatpush.msra.mxu0 0.0
    %292 = vmatpush.msra.mxu0 0.0
    %293 = vmatpush.msra.mxu0 0.0
    %294 = vmatpush.msra.mxu0 0.0
    %295 = vmatpush.msra.mxu0 0.0
    %296 = vmatpush.msra.mxu0 %v140
    %297 = vmatpush.msra.mxu0 %v139
    %298 = vmatpush.msra.mxu0 %v138
    %299 = vmatpush.msra.mxu0 %v137
    %300 = vmatpush.msra.mxu0 %v136
    %301 = vmatpush.msra.mxu0 %v135
    %302 = vmatmul.f32.gmra.mxu0 %v143
    %v303 = vpop.f32.mrf.mxu0
    %v304 = vadd.f32 0.0, %v303
    %305 = vmatmul.f32.gmra.mxu0 %v146
    %v306 = vpop.f32.mrf.mxu0
    %v307 = vadd.f32 0.0, %v306
    %308 = vmatmul.f32.gmra.mxu0 %v149
    %v309 = vpop.f32.mrf.mxu0
    %v310 = vadd.f32 0.0, %v309
    %311 = vmatmul.f32.gmra.mxu0 %v152
    %v312 = vpop.f32.mrf.mxu0
    %v313 = vadd.f32 0.0, %v312
    %314 = vmatmul.f32.gmra.mxu0 %v155
    %v315 = vpop.f32.mrf.mxu0
    %v316 = vadd.f32 0.0, %v315
    %317 = vmatmul.f32.gmra.mxu0 %v158
    %v318 = vpop.f32.mrf.mxu0
    %v319 = vadd.f32 0.0, %v318
    %320 = vmatmul.f32.gmra.mxu0 %v161
    %v321 = vpop.f32.mrf.mxu0
    %v322 = vadd.f32 0.0, %v321
    %323 = vmatmul.f32.gmra.mxu0 %v164
    %v324 = vpop.f32.mrf.mxu0
    %v325 = vadd.f32 0.0, %v324
    %326 = vmatmul.f32.gmra.mxu0 %v167
    %v327 = vpop.f32.mrf.mxu0
    %v328 = vadd.f32 0.0, %v327
    %329 = vmatmul.f32.gmra.mxu0 %v170
    %v330 = vpop.f32.mrf.mxu0
    %v331 = vadd.f32 0.0, %v330
    %332 = vmatmul.f32.gmra.mxu0 %v173
    %v333 = vpop.f32.mrf.mxu0
    %v334 = vadd.f32 0.0, %v333
    %335 = vmatmul.f32.gmra.mxu0 %v176
    %v336 = vpop.f32.mrf.mxu0
    %v337 = vadd.f32 0.0, %v336
    %338 = vmatmul.f32.gmra.mxu0 %v179
    %v339 = vpop.f32.mrf.mxu0
    %v340 = vadd.f32 0.0, %v339
    %341 = vmatmul.f32.gmra.mxu0 %v182
    %v342 = vpop.f32.mrf.mxu0
    %v343 = vadd.f32 0.0, %v342
    %344 = vmatmul.f32.gmra.mxu0 %v185
    %v345 = vpop.f32.mrf.mxu0
    %v346 = vadd.f32 0.0, %v345
    %347 = vmatmul.f32.gmra.mxu0 %v188
    %v348 = vpop.f32.mrf.mxu0
    %v349 = vadd.f32 0.0, %v348
    %350 = vmatmul.f32.gmra.mxu0 %v191
    %v351 = vpop.f32.mrf.mxu0
    %v352 = vadd.f32 0.0, %v351
    %353 = vmatmul.f32.gmra.mxu0 %v194
    %v354 = vpop.f32.mrf.mxu0
    %v355 = vadd.f32 0.0, %v354
    %356 = vmatmul.f32.gmra.mxu0 %v197
    %v357 = vpop.f32.mrf.mxu0
    %v358 = vadd.f32 0.0, %v357
    %359 = vmatmul.f32.gmra.mxu0 %v200
    %v360 = vpop.f32.mrf.mxu0
    %v361 = vadd.f32 0.0, %v360
    %362 = vmatmul.f32.gmra.mxu0 %v203
    %v363 = vpop.f32.mrf.mxu0
    %v364 = vadd.f32 0.0, %v363
    %365 = vmatmul.f32.gmra.mxu0 %v206
    %v366 = vpop.f32.mrf.mxu0
    %v367 = vadd.f32 0.0, %v366
    %368 = vmatmul.f32.gmra.mxu0 %v209
    %v369 = vpop.f32.mrf.mxu0
    %v370 = vadd.f32 0.0, %v369
    %371 = vmatmul.f32.gmra.mxu0 %v212
    %v372 = vpop.f32.mrf.mxu0
    %v373 = vadd.f32 0.0, %v372
    %374 = vmatmul.f32.gmra.mxu0 %v215
    %v375 = vpop.f32.mrf.mxu0
    %v376 = vadd.f32 0.0, %v375
    %377 = vmatmul.f32.gmra.mxu0 %v218
    %v378 = vpop.f32.mrf.mxu0
    %v379 = vadd.f32 0.0, %v378
    %380 = vmatmul.f32.gmra.mxu0 %v221
    %v381 = vpop.f32.mrf.mxu0
    %v382 = vadd.f32 0.0, %v381
    %383 = vmatmul.f32.gmra.mxu0 %v224
    %v384 = vpop.f32.mrf.mxu0
    %v385 = vadd.f32 0.0, %v384
    %386 = vmatmul.f32.gmra.mxu0 %v227
    %v387 = vpop.f32.mrf.mxu0
    %v388 = vadd.f32 0.0, %v387
    %389 = vmatmul.f32.gmra.mxu0 %v230
    %v390 = vpop.f32.mrf.mxu0
    %v391 = vadd.f32 0.0, %v390
    %392 = vmatmul.f32.gmra.mxu0 %v233
    %v393 = vpop.f32.mrf.mxu0
    %v394 = vadd.f32 0.0, %v393
    %395 = vmatmul.f32.gmra.mxu0 %v236
    %v396 = vpop.f32.mrf.mxu0
    %v397 = vadd.f32 0.0, %v396
    %398 = vmatmul.f32.gmra.mxu0 %v239
    %v399 = vpop.f32.mrf.mxu0
    %v400 = vadd.f32 0.0, %v399
    %401 = vmatmul.f32.gmra.mxu0 %v242
    %v402 = vpop.f32.mrf.mxu0
    %v403 = vadd.f32 0.0, %v402
    %404 = vmatmul.f32.gmra.mxu0 %v245
    %v405 = vpop.f32.mrf.mxu0
    %v406 = vadd.f32 0.0, %v405
    %407 = vmatmul.f32.gmra.mxu0 %v248
    %v408 = vpop.f32.mrf.mxu0
    %v409 = vadd.f32 0.0, %v408
    %410 = vmatmul.f32.gmra.mxu0 %v251
    %v411 = vpop.f32.mrf.mxu0
    %v412 = vadd.f32 0.0, %v411
    %413 = vmatmul.f32.gmra.mxu0 %v254
    %v414 = vpop.f32.mrf.mxu0
    %v415 = vadd.f32 0.0, %v414
    %416 = vmatmul.f32.gmra.mxu0 %v257
    %v417 = vpop.f32.mrf.mxu0
    %v418 = vadd.f32 0.0, %v417
    %419 = vmatmul.f32.gmra.mxu0 %v260
    %v420 = vpop.f32.mrf.mxu0
    %v421 = vadd.f32 0.0, %v420
    %422 = vmatmul.f32.gmra.mxu0 %v263
    %v423 = vpop.f32.mrf.mxu0
    %v424 = vadd.f32 0.0, %v423
    %425 = vmatmul.f32.gmra.mxu0 %v266
    %v426 = vpop.f32.mrf.mxu0
    %v427 = vadd.f32 0.0, %v426
    %428 = vmatmul.f32.gmra.mxu0 %v269
    %v429 = vpop.f32.mrf.mxu0
    %v430 = vadd.f32 0.0, %v429
    %431 = vmatmul.f32.gmra.mxu0 %v272
    %v432 = vpop.f32.mrf.mxu0
    %v433 = vadd.f32 0.0, %v432
    %434 = vmatmul.f32.gmra.mxu0 %v275
    %v435 = vpop.f32.mrf.mxu0
    %v436 = vadd.f32 0.0, %v435
    %437 = vmatmul.f32.gmra.mxu0 %v278
    %v438 = vpop.f32.mrf.mxu0
    %v439 = vadd.f32 0.0, %v438
    %440 = vmatmul.f32.gmra.mxu0 %v281
    %v441 = vpop.f32.mrf.mxu0
    %v442 = vadd.f32 0.0, %v441
    %443 = vmatmul.f32.gmra.mxu0 %v284
    %v444 = vpop.f32.mrf.mxu0
    %v445 = vadd.f32 0.0, %v444
    %446 = vdwg.mxu0
    %vm447 = vcmask 785408
    %448 = vst.msk [vmem:[#allocation2] sm:$0xff] %vm447, %v304
    %449 = vst.msk [vmem:[#allocation2 + $0x8] sm:$0xff] %vm447, %v307
    %450 = vst.msk [vmem:[#allocation2 + $0x10] sm:$0xff] %vm447, %v310
    %451 = vst.msk [vmem:[#allocation2 + $0x18] sm:$0xff] %vm447, %v313
    %452 = vst.msk [vmem:[#allocation2 + $0x20] sm:$0xff] %vm447, %v316
    %453 = vst.msk [vmem:[#allocation2 + $0x28] sm:$0xff] %vm447, %v319
    %454 = vst.msk [vmem:[#allocation2 + $0x30] sm:$0xff] %vm447, %v322
    %455 = vst.msk [vmem:[#allocation2 + $0x38] sm:$0xff] %vm447, %v325
    %456 = vst.msk [vmem:[#allocation2 + $0x40] sm:$0xff] %vm447, %v328
    %457 = vst.msk [vmem:[#allocation2 + $0x48] sm:$0xff] %vm447, %v331
    %458 = vst.msk [vmem:[#allocation2 + $0x50] sm:$0xff] %vm447, %v334
    %459 = vst.msk [vmem:[#allocation2 + $0x58] sm:$0xff] %vm447, %v337
    %460 = vst.msk [vmem:[#allocation2 + $0x60] sm:$0xff] %vm447, %v340
    %461 = vst.msk [vmem:[#allocation2 + $0x68] sm:$0xff] %vm447, %v343
    %462 = vst.msk [vmem:[#allocation2 + $0x70] sm:$0xff] %vm447, %v346
    %463 = vst.msk [vmem:[#allocation2 + $0x78] sm:$0xff] %vm447, %v349
    %464 = vst.msk [vmem:[#allocation2 + $0x80] sm:$0xff] %vm447, %v352
    %465 = vst.msk [vmem:[#allocation2 + $0x88] sm:$0xff] %vm447, %v355
    %466 = vst.msk [vmem:[#allocation2 + $0x90] sm:$0xff] %vm447, %v358
    %467 = vst.msk [vmem:[#allocation2 + $0x98] sm:$0xff] %vm447, %v361
    %468 = vst.msk [vmem:[#allocation2 + $0xa0] sm:$0xff] %vm447, %v364
    %469 = vst.msk [vmem:[#allocation2 + $0xa8] sm:$0xff] %vm447, %v367
    %470 = vst.msk [vmem:[#allocation2 + $0xb0] sm:$0xff] %vm447, %v370
    %471 = vst.msk [vmem:[#allocation2 + $0xb8] sm:$0xff] %vm447, %v373
    %472 = vst.msk [vmem:[#allocation2 + $0xc0] sm:$0xff] %vm447, %v376
    %473 = vst.msk [vmem:[#allocation2 + $0xc8] sm:$0xff] %vm447, %v379
    %474 = vst.msk [vmem:[#allocation2 + $0xd0] sm:$0xff] %vm447, %v382
    %475 = vst.msk [vmem:[#allocation2 + $0xd8] sm:$0xff] %vm447, %v385
    %476 = vst.msk [vmem:[#allocation2 + $0xe0] sm:$0xff] %vm447, %v388
    %477 = vst.msk [vmem:[#allocation2 + $0xe8] sm:$0xff] %vm447, %v391
    %478 = vst.msk [vmem:[#allocation2 + $0xf0] sm:$0xff] %vm447, %v394
    %479 = vst.msk [vmem:[#allocation2 + $0xf8] sm:$0xff] %vm447, %v397
    %480 = vst.msk [vmem:[#allocation2 + $0x100] sm:$0xff] %vm447, %v400
    %481 = vst.msk [vmem:[#allocation2 + $0x108] sm:$0xff] %vm447, %v403
    %482 = vst.msk [vmem:[#allocation2 + $0x110] sm:$0xff] %vm447, %v406
    %483 = vst.msk [vmem:[#allocation2 + $0x118] sm:$0xff] %vm447, %v409
    %484 = vst.msk [vmem:[#allocation2 + $0x120] sm:$0xff] %vm447, %v412
    %485 = vst.msk [vmem:[#allocation2 + $0x128] sm:$0xff] %vm447, %v415
    %486 = vst.msk [vmem:[#allocation2 + $0x130] sm:$0xff] %vm447, %v418
    %487 = vst.msk [vmem:[#allocation2 + $0x138] sm:$0xff] %vm447, %v421
    %488 = vst.msk [vmem:[#allocation2 + $0x140] sm:$0xff] %vm447, %v424
    %489 = vst.msk [vmem:[#allocation2 + $0x148] sm:$0xff] %vm447, %v427
    %490 = vst.msk [vmem:[#allocation2 + $0x150] sm:$0xff] %vm447, %v430
    %491 = vst.msk [vmem:[#allocation2 + $0x158] sm:$0xff] %vm447, %v433
    %492 = vst.msk [vmem:[#allocation2 + $0x160] sm:$0xff] %vm447, %v436
    %493 = vst.msk [vmem:[#allocation2 + $0x168] sm:$0xff] %vm447, %v439
    %494 = vst.msk [vmem:[#allocation2 + $0x170] sm:$0xff] %vm447, %v442
    %495 = vst.msk [vmem:[#allocation2 + $0x178] sm:$0xff] %vm447, %v445
    %s496 = scalar_lea.vmem [#allocation9], 48
    %v497 = vld [vmem:[%s496] sm:$0xff]
    %v498 = vld [vmem:[%s496 + $0x8] sm:$0xff]
    %v499 = vld [vmem:[%s496 + $0x10] sm:$0xff]
    %v500 = vld [vmem:[%s496 + $0x18] sm:$0xff]
    %v501 = vld [vmem:[%s496 + $0x20] sm:$0xff]
    %v502 = vld [vmem:[%s496 + $0x28] sm:$0xff]
    %503 = vmatpush.msra.mxu0 0.0
    %504 = vmatpush.msra.mxu0 0.0
    %505 = vmatpush.msra.mxu0 0.0
    %506 = vmatpush.msra.mxu0 0.0
    %507 = vmatpush.msra.mxu0 0.0
    %508 = vmatpush.msra.mxu0 0.0
    %509 = vmatpush.msra.mxu0 0.0
    %510 = vmatpush.msra.mxu0 0.0
    %511 = vmatpush.msra.mxu0 0.0
    %512 = vmatpush.msra.mxu0 0.0
    %513 = vmatpush.msra.mxu0 %v502
    %514 = vmatpush.msra.mxu0 %v501
    %515 = vmatpush.msra.mxu0 %v500
    %516 = vmatpush.msra.mxu0 %v499
    %517 = vmatpush.msra.mxu0 %v498
    %518 = vmatpush.msra.mxu0 %v497
    %519 = vmatmul.f32.gmra.mxu0 %v143
    %v520 = vpop.f32.mrf.mxu0
    %v521 = vadd.f32 0.0, %v520
    %522 = vmatmul.f32.gmra.mxu0 %v146
    %v523 = vpop.f32.mrf.mxu0
    %v524 = vadd.f32 0.0, %v523
    %525 = vmatmul.f32.gmra.mxu0 %v149
    %v526 = vpop.f32.mrf.mxu0
    %v527 = vadd.f32 0.0, %v526
    %528 = vmatmul.f32.gmra.mxu0 %v152
    %v529 = vpop.f32.mrf.mxu0
    %v530 = vadd.f32 0.0, %v529
    %531 = vmatmul.f32.gmra.mxu0 %v155
    %v532 = vpop.f32.mrf.mxu0
    %v533 = vadd.f32 0.0, %v532
    %534 = vmatmul.f32.gmra.mxu0 %v158
    %v535 = vpop.f32.mrf.mxu0
    %v536 = vadd.f32 0.0, %v535
    %537 = vmatmul.f32.gmra.mxu0 %v161
    %v538 = vpop.f32.mrf.mxu0
    %v539 = vadd.f32 0.0, %v538
    %540 = vmatmul.f32.gmra.mxu0 %v164
    %v541 = vpop.f32.mrf.mxu0
    %v542 = vadd.f32 0.0, %v541
    %543 = vmatmul.f32.gmra.mxu0 %v167
    %v544 = vpop.f32.mrf.mxu0
    %v545 = vadd.f32 0.0, %v544
    %546 = vmatmul.f32.gmra.mxu0 %v170
    %v547 = vpop.f32.mrf.mxu0
    %v548 = vadd.f32 0.0, %v547
    %549 = vmatmul.f32.gmra.mxu0 %v173
    %v550 = vpop.f32.mrf.mxu0
    %v551 = vadd.f32 0.0, %v550
    %552 = vmatmul.f32.gmra.mxu0 %v176
    %v553 = vpop.f32.mrf.mxu0
    %v554 = vadd.f32 0.0, %v553
    %555 = vmatmul.f32.gmra.mxu0 %v179
    %v556 = vpop.f32.mrf.mxu0
    %v557 = vadd.f32 0.0, %v556
    %558 = vmatmul.f32.gmra.mxu0 %v182
    %v559 = vpop.f32.mrf.mxu0
    %v560 = vadd.f32 0.0, %v559
    %561 = vmatmul.f32.gmra.mxu0 %v185
    %v562 = vpop.f32.mrf.mxu0
    %v563 = vadd.f32 0.0, %v562
    %564 = vmatmul.f32.gmra.mxu0 %v188
    %v565 = vpop.f32.mrf.mxu0
    %v566 = vadd.f32 0.0, %v565
    %567 = vmatmul.f32.gmra.mxu0 %v191
    %v568 = vpop.f32.mrf.mxu0
    %v569 = vadd.f32 0.0, %v568
    %570 = vmatmul.f32.gmra.mxu0 %v194
    %v571 = vpop.f32.mrf.mxu0
    %v572 = vadd.f32 0.0, %v571
    %573 = vmatmul.f32.gmra.mxu0 %v197
    %v574 = vpop.f32.mrf.mxu0
    %v575 = vadd.f32 0.0, %v574
    %576 = vmatmul.f32.gmra.mxu0 %v200
    %v577 = vpop.f32.mrf.mxu0
    %v578 = vadd.f32 0.0, %v577
    %579 = vmatmul.f32.gmra.mxu0 %v203
    %v580 = vpop.f32.mrf.mxu0
    %v581 = vadd.f32 0.0, %v580
    %582 = vmatmul.f32.gmra.mxu0 %v206
    %v583 = vpop.f32.mrf.mxu0
    %v584 = vadd.f32 0.0, %v583
    %585 = vmatmul.f32.gmra.mxu0 %v209
    %v586 = vpop.f32.mrf.mxu0
    %v587 = vadd.f32 0.0, %v586
    %588 = vmatmul.f32.gmra.mxu0 %v212
    %v589 = vpop.f32.mrf.mxu0
    %v590 = vadd.f32 0.0, %v589
    %591 = vmatmul.f32.gmra.mxu0 %v215
    %v592 = vpop.f32.mrf.mxu0
    %v593 = vadd.f32 0.0, %v592
    %594 = vmatmul.f32.gmra.mxu0 %v218
    %v595 = vpop.f32.mrf.mxu0
    %v596 = vadd.f32 0.0, %v595
    %597 = vmatmul.f32.gmra.mxu0 %v221
    %v598 = vpop.f32.mrf.mxu0
    %v599 = vadd.f32 0.0, %v598
    %600 = vmatmul.f32.gmra.mxu0 %v224
    %v601 = vpop.f32.mrf.mxu0
    %v602 = vadd.f32 0.0, %v601
    %603 = vmatmul.f32.gmra.mxu0 %v227
    %v604 = vpop.f32.mrf.mxu0
    %v605 = vadd.f32 0.0, %v604
    %606 = vmatmul.f32.gmra.mxu0 %v230
    %v607 = vpop.f32.mrf.mxu0
    %v608 = vadd.f32 0.0, %v607
    %609 = vmatmul.f32.gmra.mxu0 %v233
    %v610 = vpop.f32.mrf.mxu0
    %v611 = vadd.f32 0.0, %v610
    %612 = vmatmul.f32.gmra.mxu0 %v236
    %v613 = vpop.f32.mrf.mxu0
    %v614 = vadd.f32 0.0, %v613
    %615 = vmatmul.f32.gmra.mxu0 %v239
    %v616 = vpop.f32.mrf.mxu0
    %v617 = vadd.f32 0.0, %v616
    %618 = vmatmul.f32.gmra.mxu0 %v242
    %v619 = vpop.f32.mrf.mxu0
    %v620 = vadd.f32 0.0, %v619
    %621 = vmatmul.f32.gmra.mxu0 %v245
    %v622 = vpop.f32.mrf.mxu0
    %v623 = vadd.f32 0.0, %v622
    %624 = vmatmul.f32.gmra.mxu0 %v248
    %v625 = vpop.f32.mrf.mxu0
    %v626 = vadd.f32 0.0, %v625
    %627 = vmatmul.f32.gmra.mxu0 %v251
    %v628 = vpop.f32.mrf.mxu0
    %v629 = vadd.f32 0.0, %v628
    %630 = vmatmul.f32.gmra.mxu0 %v254
    %v631 = vpop.f32.mrf.mxu0
    %v632 = vadd.f32 0.0, %v631
    %633 = vmatmul.f32.gmra.mxu0 %v257
    %v634 = vpop.f32.mrf.mxu0
    %v635 = vadd.f32 0.0, %v634
    %636 = vmatmul.f32.gmra.mxu0 %v260
    %v637 = vpop.f32.mrf.mxu0
    %v638 = vadd.f32 0.0, %v637
    %639 = vmatmul.f32.gmra.mxu0 %v263
    %v640 = vpop.f32.mrf.mxu0
    %v641 = vadd.f32 0.0, %v640
    %642 = vmatmul.f32.gmra.mxu0 %v266
    %v643 = vpop.f32.mrf.mxu0
    %v644 = vadd.f32 0.0, %v643
    %645 = vmatmul.f32.gmra.mxu0 %v269
    %v646 = vpop.f32.mrf.mxu0
    %v647 = vadd.f32 0.0, %v646
    %648 = vmatmul.f32.gmra.mxu0 %v272
    %v649 = vpop.f32.mrf.mxu0
    %v650 = vadd.f32 0.0, %v649
    %651 = vmatmul.f32.gmra.mxu0 %v275
    %v652 = vpop.f32.mrf.mxu0
    %v653 = vadd.f32 0.0, %v652
    %654 = vmatmul.f32.gmra.mxu0 %v278
    %v655 = vpop.f32.mrf.mxu0
    %v656 = vadd.f32 0.0, %v655
    %657 = vmatmul.f32.gmra.mxu0 %v281
    %v658 = vpop.f32.mrf.mxu0
    %v659 = vadd.f32 0.0, %v658
    %660 = vmatmul.f32.gmra.mxu0 %v284
    %v661 = vpop.f32.mrf.mxu0
    %v662 = vadd.f32 0.0, %v661
    %663 = vdwg.mxu0
    %664 = vst.msk [vmem:[#allocation3] sm:$0xff] %vm447, %v521
    %665 = vst.msk [vmem:[#allocation3 + $0x8] sm:$0xff] %vm447, %v524
    %666 = vst.msk [vmem:[#allocation3 + $0x10] sm:$0xff] %vm447, %v527
    %667 = vst.msk [vmem:[#allocation3 + $0x18] sm:$0xff] %vm447, %v530
    %668 = vst.msk [vmem:[#allocation3 + $0x20] sm:$0xff] %vm447, %v533
    %669 = vst.msk [vmem:[#allocation3 + $0x28] sm:$0xff] %vm447, %v536
    %670 = vst.msk [vmem:[#allocation3 + $0x30] sm:$0xff] %vm447, %v539
    %671 = vst.msk [vmem:[#allocation3 + $0x38] sm:$0xff] %vm447, %v542
    %672 = vst.msk [vmem:[#allocation3 + $0x40] sm:$0xff] %vm447, %v545
    %673 = vst.msk [vmem:[#allocation3 + $0x48] sm:$0xff] %vm447, %v548
    %674 = vst.msk [vmem:[#allocation3 + $0x50] sm:$0xff] %vm447, %v551
    %675 = vst.msk [vmem:[#allocation3 + $0x58] sm:$0xff] %vm447, %v554
    %676 = vst.msk [vmem:[#allocation3 + $0x60] sm:$0xff] %vm447, %v557
    %677 = vst.msk [vmem:[#allocation3 + $0x68] sm:$0xff] %vm447, %v560
    %678 = vst.msk [vmem:[#allocation3 + $0x70] sm:$0xff] %vm447, %v563
    %679 = vst.msk [vmem:[#allocation3 + $0x78] sm:$0xff] %vm447, %v566
    %680 = vst.msk [vmem:[#allocation3 + $0x80] sm:$0xff] %vm447, %v569
    %681 = vst.msk [vmem:[#allocation3 + $0x88] sm:$0xff] %vm447, %v572
    %682 = vst.msk [vmem:[#allocation3 + $0x90] sm:$0xff] %vm447, %v575
    %683 = vst.msk [vmem:[#allocation3 + $0x98] sm:$0xff] %vm447, %v578
    %684 = vst.msk [vmem:[#allocation3 + $0xa0] sm:$0xff] %vm447, %v581
    %685 = vst.msk [vmem:[#allocation3 + $0xa8] sm:$0xff] %vm447, %v584
    %686 = vst.msk [vmem:[#allocation3 + $0xb0] sm:$0xff] %vm447, %v587
    %687 = vst.msk [vmem:[#allocation3 + $0xb8] sm:$0xff] %vm447, %v590
    %688 = vst.msk [vmem:[#allocation3 + $0xc0] sm:$0xff] %vm447, %v593
    %689 = vst.msk [vmem:[#allocation3 + $0xc8] sm:$0xff] %vm447, %v596
    %690 = vst.msk [vmem:[#allocation3 + $0xd0] sm:$0xff] %vm447, %v599
    %691 = vst.msk [vmem:[#allocation3 + $0xd8] sm:$0xff] %vm447, %v602
    %692 = vst.msk [vmem:[#allocation3 + $0xe0] sm:$0xff] %vm447, %v605
    %693 = vst.msk [vmem:[#allocation3 + $0xe8] sm:$0xff] %vm447, %v608
    %694 = vst.msk [vmem:[#allocation3 + $0xf0] sm:$0xff] %vm447, %v611
    %695 = vst.msk [vmem:[#allocation3 + $0xf8] sm:$0xff] %vm447, %v614
    %696 = vst.msk [vmem:[#allocation3 + $0x100] sm:$0xff] %vm447, %v617
    %697 = vst.msk [vmem:[#allocation3 + $0x108] sm:$0xff] %vm447, %v620
    %698 = vst.msk [vmem:[#allocation3 + $0x110] sm:$0xff] %vm447, %v623
    %699 = vst.msk [vmem:[#allocation3 + $0x118] sm:$0xff] %vm447, %v626
    %700 = vst.msk [vmem:[#allocation3 + $0x120] sm:$0xff] %vm447, %v629
    %701 = vst.msk [vmem:[#allocation3 + $0x128] sm:$0xff] %vm447, %v632
    %702 = vst.msk [vmem:[#allocation3 + $0x130] sm:$0xff] %vm447, %v635
    %703 = vst.msk [vmem:[#allocation3 + $0x138] sm:$0xff] %vm447, %v638
    %704 = vst.msk [vmem:[#allocation3 + $0x140] sm:$0xff] %vm447, %v641
    %705 = vst.msk [vmem:[#allocation3 + $0x148] sm:$0xff] %vm447, %v644
    %706 = vst.msk [vmem:[#allocation3 + $0x150] sm:$0xff] %vm447, %v647
    %707 = vst.msk [vmem:[#allocation3 + $0x158] sm:$0xff] %vm447, %v650
    %708 = vst.msk [vmem:[#allocation3 + $0x160] sm:$0xff] %vm447, %v653
    %709 = vst.msk [vmem:[#allocation3 + $0x168] sm:$0xff] %vm447, %v656
    %710 = vst.msk [vmem:[#allocation3 + $0x170] sm:$0xff] %vm447, %v659
    %711 = vst.msk [vmem:[#allocation3 + $0x178] sm:$0xff] %vm447, %v662
    %v712 = vld [vmem:[#allocation11] sm:$0xff]
    %v713 = vld [vmem:[#allocation11 + $0x8] sm:$0xff]
    %v714 = vld [vmem:[#allocation11 + $0x10] sm:$0xff]
    %v715 = vld [vmem:[#allocation11 + $0x18] sm:$0xff]
    %s716 = scalar_lea.vmem [#allocation11], 32
    %v717 = vld [vmem:[%s716] sm:$0xff]
    %v718 = vld [vmem:[%s716 + $0x8] sm:$0xff]
    %v719 = vld [vmem:[%s716 + $0x10] sm:$0xff]
    %v720 = vld [vmem:[%s716 + $0x18] sm:$0xff]
    loop: start=0, step=1, limit=24
    $region38: #{tpu_custom_call.1} parent=1 // loop_pre_header
      _
    $region39: #{tpu_custom_call.1} parent=1 // loop_header
      %s722 = sphi 0, %s726
      %p723 = scmp.ge.s32.totalorder %s722, 24
      %v727 = vphi 0.0, %v883
      %v728 = vphi 0.0, %v884
      %v729 = vphi 0.0, %v961
      %v730 = vphi 0.0, %v962
    $region40: #{tpu_custom_call.1} parent=1 // loop_header_branch
      %725 = sbr.rel (%p723) target = $region44
    $region41: #{tpu_custom_call.1} parent=1 // loop_body
      %s731 = ssub.s32 23, %s722
      %s732 = smul.u32 %s722, 16
      %s733 = scalar_lea.vmem [#allocation2], %s732
      %v734 = vld [vmem:[%s733] sm:$0xff]
      %v735 = vld [vmem:[%s733 + $0x8] sm:$0xff]
      %s736 = smul.u32 %s731, 16
      %s737 = scalar_lea.vmem [#allocation3], %s736
      %v738 = vld [vmem:[%s737] sm:$0xff]
      %v739 = vld [vmem:[%s737 + $0x8] sm:$0xff]
      %742 = vrot.lane.b32.xlu0 %v727, 96
      %v743 = vpop.permute.xlu0 %742
      %744 = vrot.lane.b32.xlu0 %v728, 96
      %v745 = vpop.permute.xlu0 %744
      %vm746 = vcmask 261120
      %v747 = vsel %vm746, %v743, 0
      %v749 = vsel %vm746, %v745, 0
      %751 = vmatpush.msra.mxu0 0.0
      %752 = vmatpush.msra.mxu0 0.0
      %753 = vmatpush.msra.mxu0 0.0
      %754 = vmatpush.msra.mxu0 0.0
      %755 = vmatpush.msra.mxu0 0.0
      %756 = vmatpush.msra.mxu0 0.0
      %757 = vmatpush.msra.mxu0 0.0
      %758 = vmatpush.msra.mxu0 0.0
      %759 = vmatpush.msra.mxu0 0.0
      %760 = vmatpush.msra.mxu0 0.0
      %761 = vmatpush.msra.mxu0 0.0
      %762 = vmatpush.msra.mxu0 0.0
      %763 = vmatpush.msra.mxu0 %v715
      %764 = vmatpush.msra.mxu0 %v714
      %765 = vmatpush.msra.mxu0 %v713
      %766 = vmatpush.msra.mxu0 %v712
      %767 = vmatmul.f32.gmra.mxu0 %v747
      %v768 = vpop.f32.mrf.mxu0
      %v769 = vadd.f32 0.0, %v768
      %770 = vmatmul.f32.gmra.mxu0 %v749
      %v771 = vpop.f32.mrf.mxu0
      %v772 = vadd.f32 0.0, %v771
      %773 = vdwg.mxu0
      %776 = vrot.lane.b32.xlu0 %v729, 96
      %v777 = vpop.permute.xlu0 %776
      %778 = vrot.lane.b32.xlu0 %v730, 96
      %v779 = vpop.permute.xlu0 %778
      %v780 = vsel %vm746, %v777, 0
      %v782 = vsel %vm746, %v779, 0
      %784 = vmatpush.msra.mxu0 0.0
      %785 = vmatpush.msra.mxu0 0.0
      %786 = vmatpush.msra.mxu0 0.0
      %787 = vmatpush.msra.mxu0 0.0
      %788 = vmatpush.msra.mxu0 0.0
      %789 = vmatpush.msra.mxu0 0.0
      %790 = vmatpush.msra.mxu0 0.0
      %791 = vmatpush.msra.mxu0 0.0
      %792 = vmatpush.msra.mxu0 0.0
      %793 = vmatpush.msra.mxu0 0.0
      %794 = vmatpush.msra.mxu0 0.0
      %795 = vmatpush.msra.mxu0 0.0
      %796 = vmatpush.msra.mxu0 %v720
      %797 = vmatpush.msra.mxu0 %v719
      %798 = vmatpush.msra.mxu0 %v718
      %799 = vmatpush.msra.mxu0 %v717
      %800 = vmatmul.f32.gmra.mxu0 %v780
      %v801 = vpop.f32.mrf.mxu0
      %v802 = vadd.f32 0.0, %v801
      %803 = vmatmul.f32.gmra.mxu0 %v782
      %v804 = vpop.f32.mrf.mxu0
      %v805 = vadd.f32 0.0, %v804
      %806 = vdwg.mxu0
      %v807 = vadd.f32 %v734, %v769
      %v808 = vadd.f32 %v735, %v772
      %v809 = vxor.u32 %v807, 2147483648
      %v810 = vxor.u32 %v808, 2147483648
      %v811 = vmul.f32 %v809, 1.442695
      %v812 = vpow.pop %v811
      %v813 = vmul.f32 %v810, 1.442695
      %v814 = vpow.pop %v813
      %v815 = vadd.f32 %v812, 1.0
      %v816 = vadd.f32 %v814, 1.0
      %v817 = vrcp.pop %v815
      %v818 = vmul.f32 %v815, %v817
      %v819 = vsub.f32 1.0, %v818
      %v820 = vmul.f32 %v817, %v819
      %v821 = vadd.f32 %v817, %v820
      %vm822 = vweird.f32 %v815
      %vm823 = vweird.f32 %v817
      %vm824 = vmor %vm822, %vm823
      %v825 = vsel %vm824, %v817, %v821
      %v826 = vand.u32 2147483647, %v815
      %vm827 = vcmp.eq.f32.partialorder %v826, 8.507059e+37
      %v828 = vand.u32 %v815, 2147483648
      %v829 = vor.u32 1.1754944e-38, %v828
      %v830 = vsel %vm827, %v829, %v825
      %v831 = vmul.f32 1.0, %v830
      %v832 = vrcp.pop %v816
      %v833 = vmul.f32 %v816, %v832
      %v834 = vsub.f32 1.0, %v833
      %v835 = vmul.f32 %v832, %v834
      %v836 = vadd.f32 %v832, %v835
      %vm837 = vweird.f32 %v816
      %vm838 = vweird.f32 %v832
      %vm839 = vmor %vm837, %vm838
      %v840 = vsel %vm839, %v832, %v836
      %v841 = vand.u32 2147483647, %v816
      %vm842 = vcmp.eq.f32.partialorder %v841, 8.507059e+37
      %v843 = vand.u32 %v816, 2147483648
      %v844 = vor.u32 1.1754944e-38, %v843
      %v845 = vsel %vm842, %v844, %v840
      %v846 = vmul.f32 1.0, %v845
      %849 = vrot.lane.b32.xlu0 %v769, 64
      %v850 = vpop.permute.xlu0 %849
      %851 = vrot.lane.b32.xlu0 %v772, 64
      %v852 = vpop.permute.xlu0 %851
      %v855 = vmul.f32 %v831, %v850
      %v856 = vmul.f32 %v846, %v852
      %859 = vrot.lane.b32.xlu0 %v855, 64
      %v860 = vpop.permute.xlu0 %859
      %861 = vrot.lane.b32.xlu0 %v856, 64
      %v862 = vpop.permute.xlu0 %861
      %v865 = vadd.f32 %v734, %v860
      %v866 = vadd.f32 %v735, %v862
      %v867 = vtanh.pop %v865
      %v868 = vtanh.pop %v866
      %v869 = vsub.f32 1.0, %v831
      %v870 = vsub.f32 1.0, %v846
      %873 = vrot.lane.b32.xlu0 %v867, 96
      %v874 = vpop.permute.xlu0 %873
      %875 = vrot.lane.b32.xlu0 %v868, 96
      %v876 = vpop.permute.xlu0 %875
      %v879 = vmul.f32 %v869, %v874
      %v880 = vmul.f32 %v870, %v876
      %v881 = vmul.f32 %v831, %v727
      %v882 = vmul.f32 %v846, %v728
      %v883 = vadd.f32 %v879, %v881
      %v884 = vadd.f32 %v880, %v882
      %v885 = vadd.f32 %v738, %v802
      %v886 = vadd.f32 %v739, %v805
      %v887 = vxor.u32 %v885, 2147483648
      %v888 = vxor.u32 %v886, 2147483648
      %v889 = vmul.f32 %v887, 1.442695
      %v890 = vpow.pop %v889
      %v891 = vmul.f32 %v888, 1.442695
      %v892 = vpow.pop %v891
      %v893 = vadd.f32 %v890, 1.0
      %v894 = vadd.f32 %v892, 1.0
      %v895 = vrcp.pop %v893
      %v896 = vmul.f32 %v893, %v895
      %v897 = vsub.f32 1.0, %v896
      %v898 = vmul.f32 %v895, %v897
      %v899 = vadd.f32 %v895, %v898
      %vm900 = vweird.f32 %v893
      %vm901 = vweird.f32 %v895
      %vm902 = vmor %vm900, %vm901
      %v903 = vsel %vm902, %v895, %v899
      %v904 = vand.u32 2147483647, %v893
      %vm905 = vcmp.eq.f32.partialorder %v904, 8.507059e+37
      %v906 = vand.u32 %v893, 2147483648
      %v907 = vor.u32 1.1754944e-38, %v906
      %v908 = vsel %vm905, %v907, %v903
      %v909 = vmul.f32 1.0, %v908
      %v910 = vrcp.pop %v894
      %v911 = vmul.f32 %v894, %v910
      %v912 = vsub.f32 1.0, %v911
      %v913 = vmul.f32 %v910, %v912
      %v914 = vadd.f32 %v910, %v913
      %vm915 = vweird.f32 %v894
      %vm916 = vweird.f32 %v910
      %vm917 = vmor %vm915, %vm916
      %v918 = vsel %vm917, %v910, %v914
      %v919 = vand.u32 2147483647, %v894
      %vm920 = vcmp.eq.f32.partialorder %v919, 8.507059e+37
      %v921 = vand.u32 %v894, 2147483648
      %v922 = vor.u32 1.1754944e-38, %v921
      %v923 = vsel %vm920, %v922, %v918
      %v924 = vmul.f32 1.0, %v923
      %927 = vrot.lane.b32.xlu0 %v802, 64
      %v928 = vpop.permute.xlu0 %927
      %929 = vrot.lane.b32.xlu0 %v805, 64
      %v930 = vpop.permute.xlu0 %929
      %v933 = vmul.f32 %v909, %v928
      %v934 = vmul.f32 %v924, %v930
      %937 = vrot.lane.b32.xlu0 %v933, 64
      %v938 = vpop.permute.xlu0 %937
      %939 = vrot.lane.b32.xlu0 %v934, 64
      %v940 = vpop.permute.xlu0 %939
      %v943 = vadd.f32 %v738, %v938
      %v944 = vadd.f32 %v739, %v940
      %v945 = vtanh.pop %v943
      %v946 = vtanh.pop %v944
      %v947 = vsub.f32 1.0, %v909
      %v948 = vsub.f32 1.0, %v924
      %951 = vrot.lane.b32.xlu0 %v945, 96
      %v952 = vpop.permute.xlu0 %951
      %953 = vrot.lane.b32.xlu0 %v946, 96
      %v954 = vpop.permute.xlu0 %953
      %v957 = vmul.f32 %v947, %v952
      %v958 = vmul.f32 %v948, %v954
      %v959 = vmul.f32 %v909, %v729
      %v960 = vmul.f32 %v924, %v730
      %v961 = vadd.f32 %v957, %v959
      %v962 = vadd.f32 %v958, %v960
      %965 = vrot.lane.b32.xlu0 %v883, 96
      %v966 = vpop.permute.xlu0 %965
      %967 = vrot.lane.b32.xlu0 %v884, 96
      %v968 = vpop.permute.xlu0 %967
      %s971 = scalar_lea.vmem [#allocation4], %s732
      %972 = vst.msk [vmem:[%s971] sm:$0xff] %vm746, %v966
      %973 = vst.msk [vmem:[%s971 + $0x8] sm:$0xff] %vm746, %v968
      %976 = vrot.lane.b32.xlu0 %v961, 96
      %v977 = vpop.permute.xlu0 %976
      %978 = vrot.lane.b32.xlu0 %v962, 96
      %v979 = vpop.permute.xlu0 %978
      %s982 = scalar_lea.vmem [#allocation5], %s736
      %983 = vst.msk [vmem:[%s982] sm:$0xff] %vm746, %v977
      %984 = vst.msk [vmem:[%s982 + $0x8] sm:$0xff] %vm746, %v979
    $region42: #{tpu_custom_call.1} parent=1 // loop_footer
      %s726 = sadd.s32 1, %s722
    $region43: #{tpu_custom_call.1} parent=1 // loop_footer_branch
      %721 = sbr.rel target = $region39
    $region44: #{tpu_custom_call.1} parent=1 // loop_exit
      _
    %v985 = vadd.f32 %v727, %v729
    %v986 = vadd.f32 %v728, %v730
    %v987 = vtanh.pop %v985
    %v988 = vtanh.pop %v986
    %991 = vrot.lane.b32.xlu0 %v987, 96
    %v992 = vpop.permute.xlu0 %991
    %993 = vrot.lane.b32.xlu0 %v988, 96
    %v994 = vpop.permute.xlu0 %993
    %vm997 = vcmask 261120
    %998 = vst.msk [vmem:[#allocation15] sm:$0xff] %vm997, %v992
    %999 = vst.msk [vmem:[#allocation15 + $0x8] sm:$0xff] %vm997, %v994
    %v1000 = vld [vmem:[#allocation4] sm:$0xff]
    %v1001 = vld [vmem:[#allocation4 + $0x8] sm:$0xff]
    %v1002 = vld [vmem:[#allocation4 + $0x10] sm:$0xff]
    %v1003 = vld [vmem:[#allocation4 + $0x18] sm:$0xff]
    %v1004 = vld [vmem:[#allocation4 + $0x20] sm:$0xff]
    %v1005 = vld [vmem:[#allocation4 + $0x28] sm:$0xff]
    %v1006 = vld [vmem:[#allocation4 + $0x30] sm:$0xff]
    %v1007 = vld [vmem:[#allocation4 + $0x38] sm:$0xff]
    %v1008 = vld [vmem:[#allocation4 + $0x40] sm:$0xff]
    %v1009 = vld [vmem:[#allocation4 + $0x48] sm:$0xff]
    %v1010 = vld [vmem:[#allocation4 + $0x50] sm:$0xff]
    %v1011 = vld [vmem:[#allocation4 + $0x58] sm:$0xff]
    %v1012 = vld [vmem:[#allocation4 + $0x60] sm:$0xff]
    %v1013 = vld [vmem:[#allocation4 + $0x68] sm:$0xff]
    %v1014 = vld [vmem:[#allocation4 + $0x70] sm:$0xff]
    %v1015 = vld [vmem:[#allocation4 + $0x78] sm:$0xff]
    %v1016 = vld [vmem:[#allocation4 + $0x80] sm:$0xff]
    %v1017 = vld [vmem:[#allocation4 + $0x88] sm:$0xff]
    %v1018 = vld [vmem:[#allocation4 + $0x90] sm:$0xff]
    %v1019 = vld [vmem:[#allocation4 + $0x98] sm:$0xff]
    %v1020 = vld [vmem:[#allocation4 + $0xa0] sm:$0xff]
    %v1021 = vld [vmem:[#allocation4 + $0xa8] sm:$0xff]
    %v1022 = vld [vmem:[#allocation4 + $0xb0] sm:$0xff]
    %v1023 = vld [vmem:[#allocation4 + $0xb8] sm:$0xff]
    %v1024 = vld [vmem:[#allocation4 + $0xc0] sm:$0xff]
    %v1025 = vld [vmem:[#allocation4 + $0xc8] sm:$0xff]
    %v1026 = vld [vmem:[#allocation4 + $0xd0] sm:$0xff]
    %v1027 = vld [vmem:[#allocation4 + $0xd8] sm:$0xff]
    %v1028 = vld [vmem:[#allocation4 + $0xe0] sm:$0xff]
    %v1029 = vld [vmem:[#allocation4 + $0xe8] sm:$0xff]
    %v1030 = vld [vmem:[#allocation4 + $0xf0] sm:$0xff]
    %v1031 = vld [vmem:[#allocation4 + $0xf8] sm:$0xff]
    %v1032 = vld [vmem:[#allocation4 + $0x100] sm:$0xff]
    %v1033 = vld [vmem:[#allocation4 + $0x108] sm:$0xff]
    %v1034 = vld [vmem:[#allocation4 + $0x110] sm:$0xff]
    %v1035 = vld [vmem:[#allocation4 + $0x118] sm:$0xff]
    %v1036 = vld [vmem:[#allocation4 + $0x120] sm:$0xff]
    %v1037 = vld [vmem:[#allocation4 + $0x128] sm:$0xff]
    %v1038 = vld [vmem:[#allocation4 + $0x130] sm:$0xff]
    %v1039 = vld [vmem:[#allocation4 + $0x138] sm:$0xff]
    %v1040 = vld [vmem:[#allocation4 + $0x140] sm:$0xff]
    %v1041 = vld [vmem:[#allocation4 + $0x148] sm:$0xff]
    %v1042 = vld [vmem:[#allocation4 + $0x150] sm:$0xff]
    %v1043 = vld [vmem:[#allocation4 + $0x158] sm:$0xff]
    %v1044 = vld [vmem:[#allocation4 + $0x160] sm:$0xff]
    %v1045 = vld [vmem:[#allocation4 + $0x168] sm:$0xff]
    %v1046 = vld [vmem:[#allocation4 + $0x170] sm:$0xff]
    %v1047 = vld [vmem:[#allocation4 + $0x178] sm:$0xff]
    %v1048 = vld [vmem:[#allocation12] sm:$0xff]
    %v1049 = vld [vmem:[#allocation12 + $0x8] sm:$0xff]
    %v1050 = vld [vmem:[#allocation12 + $0x10] sm:$0xff]
    %v1051 = vld [vmem:[#allocation12 + $0x18] sm:$0xff]
    %v1052 = vld [vmem:[#allocation5] sm:$0xff]
    %v1053 = vld [vmem:[#allocation5 + $0x8] sm:$0xff]
    %v1054 = vld [vmem:[#allocation5 + $0x10] sm:$0xff]
    %v1055 = vld [vmem:[#allocation5 + $0x18] sm:$0xff]
    %v1056 = vld [vmem:[#allocation5 + $0x20] sm:$0xff]
    %v1057 = vld [vmem:[#allocation5 + $0x28] sm:$0xff]
    %v1058 = vld [vmem:[#allocation5 + $0x30] sm:$0xff]
    %v1059 = vld [vmem:[#allocation5 + $0x38] sm:$0xff]
    %v1060 = vld [vmem:[#allocation5 + $0x40] sm:$0xff]
    %v1061 = vld [vmem:[#allocation5 + $0x48] sm:$0xff]
    %v1062 = vld [vmem:[#allocation5 + $0x50] sm:$0xff]
    %v1063 = vld [vmem:[#allocation5 + $0x58] sm:$0xff]
    %v1064 = vld [vmem:[#allocation5 + $0x60] sm:$0xff]
    %v1065 = vld [vmem:[#allocation5 + $0x68] sm:$0xff]
    %v1066 = vld [vmem:[#allocation5 + $0x70] sm:$0xff]
    %v1067 = vld [vmem:[#allocation5 + $0x78] sm:$0xff]
    %v1068 = vld [vmem:[#allocation5 + $0x80] sm:$0xff]
    %v1069 = vld [vmem:[#allocation5 + $0x88] sm:$0xff]
    %v1070 = vld [vmem:[#allocation5 + $0x90] sm:$0xff]
    %v1071 = vld [vmem:[#allocation5 + $0x98] sm:$0xff]
    %v1072 = vld [vmem:[#allocation5 + $0xa0] sm:$0xff]
    %v1073 = vld [vmem:[#allocation5 + $0xa8] sm:$0xff]
    %v1074 = vld [vmem:[#allocation5 + $0xb0] sm:$0xff]
    %v1075 = vld [vmem:[#allocation5 + $0xb8] sm:$0xff]
    %v1076 = vld [vmem:[#allocation5 + $0xc0] sm:$0xff]
    %v1077 = vld [vmem:[#allocation5 + $0xc8] sm:$0xff]
    %v1078 = vld [vmem:[#allocation5 + $0xd0] sm:$0xff]
    %v1079 = vld [vmem:[#allocation5 + $0xd8] sm:$0xff]
    %v1080 = vld [vmem:[#allocation5 + $0xe0] sm:$0xff]
    %v1081 = vld [vmem:[#allocation5 + $0xe8] sm:$0xff]
    %v1082 = vld [vmem:[#allocation5 + $0xf0] sm:$0xff]
    %v1083 = vld [vmem:[#allocation5 + $0xf8] sm:$0xff]
    %v1084 = vld [vmem:[#allocation5 + $0x100] sm:$0xff]
    %v1085 = vld [vmem:[#allocation5 + $0x108] sm:$0xff]
    %v1086 = vld [vmem:[#allocation5 + $0x110] sm:$0xff]
    %v1087 = vld [vmem:[#allocation5 + $0x118] sm:$0xff]
    %v1088 = vld [vmem:[#allocation5 + $0x120] sm:$0xff]
    %v1089 = vld [vmem:[#allocation5 + $0x128] sm:$0xff]
    %v1090 = vld [vmem:[#allocation5 + $0x130] sm:$0xff]
    %v1091 = vld [vmem:[#allocation5 + $0x138] sm:$0xff]
    %v1092 = vld [vmem:[#allocation5 + $0x140] sm:$0xff]
    %v1093 = vld [vmem:[#allocation5 + $0x148] sm:$0xff]
    %v1094 = vld [vmem:[#allocation5 + $0x150] sm:$0xff]
    %v1095 = vld [vmem:[#allocation5 + $0x158] sm:$0xff]
    %v1096 = vld [vmem:[#allocation5 + $0x160] sm:$0xff]
    %v1097 = vld [vmem:[#allocation5 + $0x168] sm:$0xff]
    %v1098 = vld [vmem:[#allocation5 + $0x170] sm:$0xff]
    %v1099 = vld [vmem:[#allocation5 + $0x178] sm:$0xff]
    %s1100 = scalar_lea.vmem [#allocation12], 32
    %v1101 = vld [vmem:[%s1100] sm:$0xff]
    %v1102 = vld [vmem:[%s1100 + $0x8] sm:$0xff]
    %v1103 = vld [vmem:[%s1100 + $0x10] sm:$0xff]
    %v1104 = vld [vmem:[%s1100 + $0x18] sm:$0xff]
    %v1106 = vsel %vm997, %v1052, 0
    %v1109 = vsel %vm997, %v1053, 0
    %v1112 = vsel %vm997, %v1054, 0
    %v1115 = vsel %vm997, %v1055, 0
    %v1118 = vsel %vm997, %v1056, 0
    %v1121 = vsel %vm997, %v1057, 0
    %v1124 = vsel %vm997, %v1058, 0
    %v1127 = vsel %vm997, %v1059, 0
    %v1130 = vsel %vm997, %v1060, 0
    %v1133 = vsel %vm997, %v1061, 0
    %v1136 = vsel %vm997, %v1062, 0
    %v1139 = vsel %vm997, %v1063, 0
    %v1142 = vsel %vm997, %v1064, 0
    %v1145 = vsel %vm997, %v1065, 0
    %v1148 = vsel %vm997, %v1066, 0
    %v1151 = vsel %vm997, %v1067, 0
    %v1154 = vsel %vm997, %v1068, 0
    %v1157 = vsel %vm997, %v1069, 0
    %v1160 = vsel %vm997, %v1070, 0
    %v1163 = vsel %vm997, %v1071, 0
    %v1166 = vsel %vm997, %v1072, 0
    %v1169 = vsel %vm997, %v1073, 0
    %v1172 = vsel %vm997, %v1074, 0
    %v1175 = vsel %vm997, %v1075, 0
    %v1178 = vsel %vm997, %v1076, 0
    %v1181 = vsel %vm997, %v1077, 0
    %v1184 = vsel %vm997, %v1078, 0
    %v1187 = vsel %vm997, %v1079, 0
    %v1190 = vsel %vm997, %v1080, 0
    %v1193 = vsel %vm997, %v1081, 0
    %v1196 = vsel %vm997, %v1082, 0
    %v1199 = vsel %vm997, %v1083, 0
    %v1202 = vsel %vm997, %v1084, 0
    %v1205 = vsel %vm997, %v1085, 0
    %v1208 = vsel %vm997, %v1086, 0
    %v1211 = vsel %vm997, %v1087, 0
    %v1214 = vsel %vm997, %v1088, 0
    %v1217 = vsel %vm997, %v1089, 0
    %v1220 = vsel %vm997, %v1090, 0
    %v1223 = vsel %vm997, %v1091, 0
    %v1226 = vsel %vm997, %v1092, 0
    %v1229 = vsel %vm997, %v1093, 0
    %v1232 = vsel %vm997, %v1094, 0
    %v1235 = vsel %vm997, %v1095, 0
    %v1238 = vsel %vm997, %v1096, 0
    %v1241 = vsel %vm997, %v1097, 0
    %v1244 = vsel %vm997, %v1098, 0
    %v1247 = vsel %vm997, %v1099, 0
    %1249 = vmatpush.msra.mxu0 0.0
    %1250 = vmatpush.msra.mxu0 0.0
    %1251 = vmatpush.msra.mxu0 0.0
    %1252 = vmatpush.msra.mxu0 0.0
    %1253 = vmatpush.msra.mxu0 0.0
    %1254 = vmatpush.msra.mxu0 0.0
    %1255 = vmatpush.msra.mxu0 0.0
    %1256 = vmatpush.msra.mxu0 0.0
    %1257 = vmatpush.msra.mxu0 0.0
    %1258 = vmatpush.msra.mxu0 0.0
    %1259 = vmatpush.msra.mxu0 0.0
    %1260 = vmatpush.msra.mxu0 0.0
    %1261 = vmatpush.msra.mxu0 %v1104
    %1262 = vmatpush.msra.mxu0 %v1103
    %1263 = vmatpush.msra.mxu0 %v1102
    %1264 = vmatpush.msra.mxu0 %v1101
    %1265 = vmatmul.f32.gmra.mxu0 %v1106
    %v1266 = vpop.f32.mrf.mxu0
    %v1267 = vadd.f32 0.0, %v1266
    %1268 = vmatmul.f32.gmra.mxu0 %v1109
    %v1269 = vpop.f32.mrf.mxu0
    %v1270 = vadd.f32 0.0, %v1269
    %1271 = vmatmul.f32.gmra.mxu0 %v1112
    %v1272 = vpop.f32.mrf.mxu0
    %v1273 = vadd.f32 0.0, %v1272
    %1274 = vmatmul.f32.gmra.mxu0 %v1115
    %v1275 = vpop.f32.mrf.mxu0
    %v1276 = vadd.f32 0.0, %v1275
    %1277 = vmatmul.f32.gmra.mxu0 %v1118
    %v1278 = vpop.f32.mrf.mxu0
    %v1279 = vadd.f32 0.0, %v1278
    %1280 = vmatmul.f32.gmra.mxu0 %v1121
    %v1281 = vpop.f32.mrf.mxu0
    %v1282 = vadd.f32 0.0, %v1281
    %1283 = vmatmul.f32.gmra.mxu0 %v1124
    %v1284 = vpop.f32.mrf.mxu0
    %v1285 = vadd.f32 0.0, %v1284
    %1286 = vmatmul.f32.gmra.mxu0 %v1127
    %v1287 = vpop.f32.mrf.mxu0
    %v1288 = vadd.f32 0.0, %v1287
    %1289 = vmatmul.f32.gmra.mxu0 %v1130
    %v1290 = vpop.f32.mrf.mxu0
    %v1291 = vadd.f32 0.0, %v1290
    %1292 = vmatmul.f32.gmra.mxu0 %v1133
    %v1293 = vpop.f32.mrf.mxu0
    %v1294 = vadd.f32 0.0, %v1293
    %1295 = vmatmul.f32.gmra.mxu0 %v1136
    %v1296 = vpop.f32.mrf.mxu0
    %v1297 = vadd.f32 0.0, %v1296
    %1298 = vmatmul.f32.gmra.mxu0 %v1139
    %v1299 = vpop.f32.mrf.mxu0
    %v1300 = vadd.f32 0.0, %v1299
    %1301 = vmatmul.f32.gmra.mxu0 %v1142
    %v1302 = vpop.f32.mrf.mxu0
    %v1303 = vadd.f32 0.0, %v1302
    %1304 = vmatmul.f32.gmra.mxu0 %v1145
    %v1305 = vpop.f32.mrf.mxu0
    %v1306 = vadd.f32 0.0, %v1305
    %1307 = vmatmul.f32.gmra.mxu0 %v1148
    %v1308 = vpop.f32.mrf.mxu0
    %v1309 = vadd.f32 0.0, %v1308
    %1310 = vmatmul.f32.gmra.mxu0 %v1151
    %v1311 = vpop.f32.mrf.mxu0
    %v1312 = vadd.f32 0.0, %v1311
    %1313 = vmatmul.f32.gmra.mxu0 %v1154
    %v1314 = vpop.f32.mrf.mxu0
    %v1315 = vadd.f32 0.0, %v1314
    %1316 = vmatmul.f32.gmra.mxu0 %v1157
    %v1317 = vpop.f32.mrf.mxu0
    %v1318 = vadd.f32 0.0, %v1317
    %1319 = vmatmul.f32.gmra.mxu0 %v1160
    %v1320 = vpop.f32.mrf.mxu0
    %v1321 = vadd.f32 0.0, %v1320
    %1322 = vmatmul.f32.gmra.mxu0 %v1163
    %v1323 = vpop.f32.mrf.mxu0
    %v1324 = vadd.f32 0.0, %v1323
    %1325 = vmatmul.f32.gmra.mxu0 %v1166
    %v1326 = vpop.f32.mrf.mxu0
    %v1327 = vadd.f32 0.0, %v1326
    %1328 = vmatmul.f32.gmra.mxu0 %v1169
    %v1329 = vpop.f32.mrf.mxu0
    %v1330 = vadd.f32 0.0, %v1329
    %1331 = vmatmul.f32.gmra.mxu0 %v1172
    %v1332 = vpop.f32.mrf.mxu0
    %v1333 = vadd.f32 0.0, %v1332
    %1334 = vmatmul.f32.gmra.mxu0 %v1175
    %v1335 = vpop.f32.mrf.mxu0
    %v1336 = vadd.f32 0.0, %v1335
    %1337 = vmatmul.f32.gmra.mxu0 %v1178
    %v1338 = vpop.f32.mrf.mxu0
    %v1339 = vadd.f32 0.0, %v1338
    %1340 = vmatmul.f32.gmra.mxu0 %v1181
    %v1341 = vpop.f32.mrf.mxu0
    %v1342 = vadd.f32 0.0, %v1341
    %1343 = vmatmul.f32.gmra.mxu0 %v1184
    %v1344 = vpop.f32.mrf.mxu0
    %v1345 = vadd.f32 0.0, %v1344
    %1346 = vmatmul.f32.gmra.mxu0 %v1187
    %v1347 = vpop.f32.mrf.mxu0
    %v1348 = vadd.f32 0.0, %v1347
    %1349 = vmatmul.f32.gmra.mxu0 %v1190
    %v1350 = vpop.f32.mrf.mxu0
    %v1351 = vadd.f32 0.0, %v1350
    %1352 = vmatmul.f32.gmra.mxu0 %v1193
    %v1353 = vpop.f32.mrf.mxu0
    %v1354 = vadd.f32 0.0, %v1353
    %1355 = vmatmul.f32.gmra.mxu0 %v1196
    %v1356 = vpop.f32.mrf.mxu0
    %v1357 = vadd.f32 0.0, %v1356
    %1358 = vmatmul.f32.gmra.mxu0 %v1199
    %v1359 = vpop.f32.mrf.mxu0
    %v1360 = vadd.f32 0.0, %v1359
    %1361 = vmatmul.f32.gmra.mxu0 %v1202
    %v1362 = vpop.f32.mrf.mxu0
    %v1363 = vadd.f32 0.0, %v1362
    %1364 = vmatmul.f32.gmra.mxu0 %v1205
    %v1365 = vpop.f32.mrf.mxu0
    %v1366 = vadd.f32 0.0, %v1365
    %1367 = vmatmul.f32.gmra.mxu0 %v1208
    %v1368 = vpop.f32.mrf.mxu0
    %v1369 = vadd.f32 0.0, %v1368
    %1370 = vmatmul.f32.gmra.mxu0 %v1211
    %v1371 = vpop.f32.mrf.mxu0
    %v1372 = vadd.f32 0.0, %v1371
    %1373 = vmatmul.f32.gmra.mxu0 %v1214
    %v1374 = vpop.f32.mrf.mxu0
    %v1375 = vadd.f32 0.0, %v1374
    %1376 = vmatmul.f32.gmra.mxu0 %v1217
    %v1377 = vpop.f32.mrf.mxu0
    %v1378 = vadd.f32 0.0, %v1377
    %1379 = vmatmul.f32.gmra.mxu0 %v1220
    %v1380 = vpop.f32.mrf.mxu0
    %v1381 = vadd.f32 0.0, %v1380
    %1382 = vmatmul.f32.gmra.mxu0 %v1223
    %v1383 = vpop.f32.mrf.mxu0
    %v1384 = vadd.f32 0.0, %v1383
    %1385 = vmatmul.f32.gmra.mxu0 %v1226
    %v1386 = vpop.f32.mrf.mxu0
    %v1387 = vadd.f32 0.0, %v1386
    %1388 = vmatmul.f32.gmra.mxu0 %v1229
    %v1389 = vpop.f32.mrf.mxu0
    %v1390 = vadd.f32 0.0, %v1389
    %1391 = vmatmul.f32.gmra.mxu0 %v1232
    %v1392 = vpop.f32.mrf.mxu0
    %v1393 = vadd.f32 0.0, %v1392
    %1394 = vmatmul.f32.gmra.mxu0 %v1235
    %v1395 = vpop.f32.mrf.mxu0
    %v1396 = vadd.f32 0.0, %v1395
    %1397 = vmatmul.f32.gmra.mxu0 %v1238
    %v1398 = vpop.f32.mrf.mxu0
    %v1399 = vadd.f32 0.0, %v1398
    %1400 = vmatmul.f32.gmra.mxu0 %v1241
    %v1401 = vpop.f32.mrf.mxu0
    %v1402 = vadd.f32 0.0, %v1401
    %1403 = vmatmul.f32.gmra.mxu0 %v1244
    %v1404 = vpop.f32.mrf.mxu0
    %v1405 = vadd.f32 0.0, %v1404
    %1406 = vmatmul.f32.gmra.mxu0 %v1247
    %v1407 = vpop.f32.mrf.mxu0
    %v1408 = vadd.f32 0.0, %v1407
    %1409 = vdwg.mxu0
    %v1411 = vsel %vm997, %v1000, 0
    %v1414 = vsel %vm997, %v1001, 0
    %v1417 = vsel %vm997, %v1002, 0
    %v1420 = vsel %vm997, %v1003, 0
    %v1423 = vsel %vm997, %v1004, 0
    %v1426 = vsel %vm997, %v1005, 0
    %v1429 = vsel %vm997, %v1006, 0
    %v1432 = vsel %vm997, %v1007, 0
    %v1435 = vsel %vm997, %v1008, 0
    %v1438 = vsel %vm997, %v1009, 0
    %v1441 = vsel %vm997, %v1010, 0
    %v1444 = vsel %vm997, %v1011, 0
    %v1447 = vsel %vm997, %v1012, 0
    %v1450 = vsel %vm997, %v1013, 0
    %v1453 = vsel %vm997, %v1014, 0
    %v1456 = vsel %vm997, %v1015, 0
    %v1459 = vsel %vm997, %v1016, 0
    %v1462 = vsel %vm997, %v1017, 0
    %v1465 = vsel %vm997, %v1018, 0
    %v1468 = vsel %vm997, %v1019, 0
    %v1471 = vsel %vm997, %v1020, 0
    %v1474 = vsel %vm997, %v1021, 0
    %v1477 = vsel %vm997, %v1022, 0
    %v1480 = vsel %vm997, %v1023, 0
    %v1483 = vsel %vm997, %v1024, 0
    %v1486 = vsel %vm997, %v1025, 0
    %v1489 = vsel %vm997, %v1026, 0
    %v1492 = vsel %vm997, %v1027, 0
    %v1495 = vsel %vm997, %v1028, 0
    %v1498 = vsel %vm997, %v1029, 0
    %v1501 = vsel %vm997, %v1030, 0
    %v1504 = vsel %vm997, %v1031, 0
    %v1507 = vsel %vm997, %v1032, 0
    %v1510 = vsel %vm997, %v1033, 0
    %v1513 = vsel %vm997, %v1034, 0
    %v1516 = vsel %vm997, %v1035, 0
    %v1519 = vsel %vm997, %v1036, 0
    %v1522 = vsel %vm997, %v1037, 0
    %v1525 = vsel %vm997, %v1038, 0
    %v1528 = vsel %vm997, %v1039, 0
    %v1531 = vsel %vm997, %v1040, 0
    %v1534 = vsel %vm997, %v1041, 0
    %v1537 = vsel %vm997, %v1042, 0
    %v1540 = vsel %vm997, %v1043, 0
    %v1543 = vsel %vm997, %v1044, 0
    %v1546 = vsel %vm997, %v1045, 0
    %v1549 = vsel %vm997, %v1046, 0
    %v1552 = vsel %vm997, %v1047, 0
    %1554 = vmatpush.msra.mxu0 0.0
    %1555 = vmatpush.msra.mxu0 0.0
    %1556 = vmatpush.msra.mxu0 0.0
    %1557 = vmatpush.msra.mxu0 0.0
    %1558 = vmatpush.msra.mxu0 0.0
    %1559 = vmatpush.msra.mxu0 0.0
    %1560 = vmatpush.msra.mxu0 0.0
    %1561 = vmatpush.msra.mxu0 0.0
    %1562 = vmatpush.msra.mxu0 0.0
    %1563 = vmatpush.msra.mxu0 0.0
    %1564 = vmatpush.msra.mxu0 0.0
    %1565 = vmatpush.msra.mxu0 0.0
    %1566 = vmatpush.msra.mxu0 %v1051
    %1567 = vmatpush.msra.mxu0 %v1050
    %1568 = vmatpush.msra.mxu0 %v1049
    %1569 = vmatpush.msra.mxu0 %v1048
    %1570 = vmatmul.f32.gmra.mxu0 %v1411
    %v1571 = vpop.f32.mrf.mxu0
    %v1572 = vadd.f32 %v1267, %v1571
    %1573 = vmatmul.f32.gmra.mxu0 %v1414
    %v1574 = vpop.f32.mrf.mxu0
    %v1575 = vadd.f32 %v1270, %v1574
    %1576 = vmatmul.f32.gmra.mxu0 %v1417
    %v1577 = vpop.f32.mrf.mxu0
    %v1578 = vadd.f32 %v1273, %v1577
    %1579 = vmatmul.f32.gmra.mxu0 %v1420
    %v1580 = vpop.f32.mrf.mxu0
    %v1581 = vadd.f32 %v1276, %v1580
    %1582 = vmatmul.f32.gmra.mxu0 %v1423
    %v1583 = vpop.f32.mrf.mxu0
    %v1584 = vadd.f32 %v1279, %v1583
    %1585 = vmatmul.f32.gmra.mxu0 %v1426
    %v1586 = vpop.f32.mrf.mxu0
    %v1587 = vadd.f32 %v1282, %v1586
    %1588 = vmatmul.f32.gmra.mxu0 %v1429
    %v1589 = vpop.f32.mrf.mxu0
    %v1590 = vadd.f32 %v1285, %v1589
    %1591 = vmatmul.f32.gmra.mxu0 %v1432
    %v1592 = vpop.f32.mrf.mxu0
    %v1593 = vadd.f32 %v1288, %v1592
    %1594 = vmatmul.f32.gmra.mxu0 %v1435
    %v1595 = vpop.f32.mrf.mxu0
    %v1596 = vadd.f32 %v1291, %v1595
    %1597 = vmatmul.f32.gmra.mxu0 %v1438
    %v1598 = vpop.f32.mrf.mxu0
    %v1599 = vadd.f32 %v1294, %v1598
    %1600 = vmatmul.f32.gmra.mxu0 %v1441
    %v1601 = vpop.f32.mrf.mxu0
    %v1602 = vadd.f32 %v1297, %v1601
    %1603 = vmatmul.f32.gmra.mxu0 %v1444
    %v1604 = vpop.f32.mrf.mxu0
    %v1605 = vadd.f32 %v1300, %v1604
    %1606 = vmatmul.f32.gmra.mxu0 %v1447
    %v1607 = vpop.f32.mrf.mxu0
    %v1608 = vadd.f32 %v1303, %v1607
    %1609 = vmatmul.f32.gmra.mxu0 %v1450
    %v1610 = vpop.f32.mrf.mxu0
    %v1611 = vadd.f32 %v1306, %v1610
    %1612 = vmatmul.f32.gmra.mxu0 %v1453
    %v1613 = vpop.f32.mrf.mxu0
    %v1614 = vadd.f32 %v1309, %v1613
    %1615 = vmatmul.f32.gmra.mxu0 %v1456
    %v1616 = vpop.f32.mrf.mxu0
    %v1617 = vadd.f32 %v1312, %v1616
    %1618 = vmatmul.f32.gmra.mxu0 %v1459
    %v1619 = vpop.f32.mrf.mxu0
    %v1620 = vadd.f32 %v1315, %v1619
    %1621 = vmatmul.f32.gmra.mxu0 %v1462
    %v1622 = vpop.f32.mrf.mxu0
    %v1623 = vadd.f32 %v1318, %v1622
    %1624 = vmatmul.f32.gmra.mxu0 %v1465
    %v1625 = vpop.f32.mrf.mxu0
    %v1626 = vadd.f32 %v1321, %v1625
    %1627 = vmatmul.f32.gmra.mxu0 %v1468
    %v1628 = vpop.f32.mrf.mxu0
    %v1629 = vadd.f32 %v1324, %v1628
    %1630 = vmatmul.f32.gmra.mxu0 %v1471
    %v1631 = vpop.f32.mrf.mxu0
    %v1632 = vadd.f32 %v1327, %v1631
    %1633 = vmatmul.f32.gmra.mxu0 %v1474
    %v1634 = vpop.f32.mrf.mxu0
    %v1635 = vadd.f32 %v1330, %v1634
    %1636 = vmatmul.f32.gmra.mxu0 %v1477
    %v1637 = vpop.f32.mrf.mxu0
    %v1638 = vadd.f32 %v1333, %v1637
    %1639 = vmatmul.f32.gmra.mxu0 %v1480
    %v1640 = vpop.f32.mrf.mxu0
    %v1641 = vadd.f32 %v1336, %v1640
    %1642 = vmatmul.f32.gmra.mxu0 %v1483
    %v1643 = vpop.f32.mrf.mxu0
    %v1644 = vadd.f32 %v1339, %v1643
    %1645 = vmatmul.f32.gmra.mxu0 %v1486
    %v1646 = vpop.f32.mrf.mxu0
    %v1647 = vadd.f32 %v1342, %v1646
    %1648 = vmatmul.f32.gmra.mxu0 %v1489
    %v1649 = vpop.f32.mrf.mxu0
    %v1650 = vadd.f32 %v1345, %v1649
    %1651 = vmatmul.f32.gmra.mxu0 %v1492
    %v1652 = vpop.f32.mrf.mxu0
    %v1653 = vadd.f32 %v1348, %v1652
    %1654 = vmatmul.f32.gmra.mxu0 %v1495
    %v1655 = vpop.f32.mrf.mxu0
    %v1656 = vadd.f32 %v1351, %v1655
    %1657 = vmatmul.f32.gmra.mxu0 %v1498
    %v1658 = vpop.f32.mrf.mxu0
    %v1659 = vadd.f32 %v1354, %v1658
    %1660 = vmatmul.f32.gmra.mxu0 %v1501
    %v1661 = vpop.f32.mrf.mxu0
    %v1662 = vadd.f32 %v1357, %v1661
    %1663 = vmatmul.f32.gmra.mxu0 %v1504
    %v1664 = vpop.f32.mrf.mxu0
    %v1665 = vadd.f32 %v1360, %v1664
    %1666 = vmatmul.f32.gmra.mxu0 %v1507
    %v1667 = vpop.f32.mrf.mxu0
    %v1668 = vadd.f32 %v1363, %v1667
    %1669 = vmatmul.f32.gmra.mxu0 %v1510
    %v1670 = vpop.f32.mrf.mxu0
    %v1671 = vadd.f32 %v1366, %v1670
    %1672 = vmatmul.f32.gmra.mxu0 %v1513
    %v1673 = vpop.f32.mrf.mxu0
    %v1674 = vadd.f32 %v1369, %v1673
    %1675 = vmatmul.f32.gmra.mxu0 %v1516
    %v1676 = vpop.f32.mrf.mxu0
    %v1677 = vadd.f32 %v1372, %v1676
    %1678 = vmatmul.f32.gmra.mxu0 %v1519
    %v1679 = vpop.f32.mrf.mxu0
    %v1680 = vadd.f32 %v1375, %v1679
    %1681 = vmatmul.f32.gmra.mxu0 %v1522
    %v1682 = vpop.f32.mrf.mxu0
    %v1683 = vadd.f32 %v1378, %v1682
    %1684 = vmatmul.f32.gmra.mxu0 %v1525
    %v1685 = vpop.f32.mrf.mxu0
    %v1686 = vadd.f32 %v1381, %v1685
    %1687 = vmatmul.f32.gmra.mxu0 %v1528
    %v1688 = vpop.f32.mrf.mxu0
    %v1689 = vadd.f32 %v1384, %v1688
    %1690 = vmatmul.f32.gmra.mxu0 %v1531
    %v1691 = vpop.f32.mrf.mxu0
    %v1692 = vadd.f32 %v1387, %v1691
    %1693 = vmatmul.f32.gmra.mxu0 %v1534
    %v1694 = vpop.f32.mrf.mxu0
    %v1695 = vadd.f32 %v1390, %v1694
    %1696 = vmatmul.f32.gmra.mxu0 %v1537
    %v1697 = vpop.f32.mrf.mxu0
    %v1698 = vadd.f32 %v1393, %v1697
    %1699 = vmatmul.f32.gmra.mxu0 %v1540
    %v1700 = vpop.f32.mrf.mxu0
    %v1701 = vadd.f32 %v1396, %v1700
    %1702 = vmatmul.f32.gmra.mxu0 %v1543
    %v1703 = vpop.f32.mrf.mxu0
    %v1704 = vadd.f32 %v1399, %v1703
    %1705 = vmatmul.f32.gmra.mxu0 %v1546
    %v1706 = vpop.f32.mrf.mxu0
    %v1707 = vadd.f32 %v1402, %v1706
    %1708 = vmatmul.f32.gmra.mxu0 %v1549
    %v1709 = vpop.f32.mrf.mxu0
    %v1710 = vadd.f32 %v1405, %v1709
    %1711 = vmatmul.f32.gmra.mxu0 %v1552
    %v1712 = vpop.f32.mrf.mxu0
    %v1713 = vadd.f32 %v1408, %v1712
    %1714 = vdwg.mxu0
    %v1715 = vld [vmem:[%s4] sm:$0x1]
    %v1717 = vperm.slane %v1715, 0
    %v1719 = vadd.f32 %v1572, %v1717
    %v1720 = vadd.f32 %v1575, %v1717
    %v1721 = vadd.f32 %v1578, %v1717
    %v1722 = vadd.f32 %v1581, %v1717
    %v1723 = vadd.f32 %v1584, %v1717
    %v1724 = vadd.f32 %v1587, %v1717
    %v1725 = vadd.f32 %v1590, %v1717
    %v1726 = vadd.f32 %v1593, %v1717
    %v1727 = vadd.f32 %v1596, %v1717
    %v1728 = vadd.f32 %v1599, %v1717
    %v1729 = vadd.f32 %v1602, %v1717
    %v1730 = vadd.f32 %v1605, %v1717
    %v1731 = vadd.f32 %v1608, %v1717
    %v1732 = vadd.f32 %v1611, %v1717
    %v1733 = vadd.f32 %v1614, %v1717
    %v1734 = vadd.f32 %v1617, %v1717
    %v1735 = vadd.f32 %v1620, %v1717
    %v1736 = vadd.f32 %v1623, %v1717
    %v1737 = vadd.f32 %v1626, %v1717
    %v1738 = vadd.f32 %v1629, %v1717
    %v1739 = vadd.f32 %v1632, %v1717
    %v1740 = vadd.f32 %v1635, %v1717
    %v1741 = vadd.f32 %v1638, %v1717
    %v1742 = vadd.f32 %v1641, %v1717
    %v1743 = vadd.f32 %v1644, %v1717
    %v1744 = vadd.f32 %v1647, %v1717
    %v1745 = vadd.f32 %v1650, %v1717
    %v1746 = vadd.f32 %v1653, %v1717
    %v1747 = vadd.f32 %v1656, %v1717
    %v1748 = vadd.f32 %v1659, %v1717
    %v1749 = vadd.f32 %v1662, %v1717
    %v1750 = vadd.f32 %v1665, %v1717
    %v1751 = vadd.f32 %v1668, %v1717
    %v1752 = vadd.f32 %v1671, %v1717
    %v1753 = vadd.f32 %v1674, %v1717
    %v1754 = vadd.f32 %v1677, %v1717
    %v1755 = vadd.f32 %v1680, %v1717
    %v1756 = vadd.f32 %v1683, %v1717
    %v1757 = vadd.f32 %v1686, %v1717
    %v1758 = vadd.f32 %v1689, %v1717
    %v1759 = vadd.f32 %v1692, %v1717
    %v1760 = vadd.f32 %v1695, %v1717
    %v1761 = vadd.f32 %v1698, %v1717
    %v1762 = vadd.f32 %v1701, %v1717
    %v1763 = vadd.f32 %v1704, %v1717
    %v1764 = vadd.f32 %v1707, %v1717
    %v1765 = vadd.f32 %v1710, %v1717
    %v1766 = vadd.f32 %v1713, %v1717
    %v1767 = vtanh.pop %v1719
    %v1768 = vtanh.pop %v1720
    %v1769 = vtanh.pop %v1721
    %v1770 = vtanh.pop %v1722
    %v1771 = vtanh.pop %v1723
    %v1772 = vtanh.pop %v1724
    %v1773 = vtanh.pop %v1725
    %v1774 = vtanh.pop %v1726
    %v1775 = vtanh.pop %v1727
    %v1776 = vtanh.pop %v1728
    %v1777 = vtanh.pop %v1729
    %v1778 = vtanh.pop %v1730
    %v1779 = vtanh.pop %v1731
    %v1780 = vtanh.pop %v1732
    %v1781 = vtanh.pop %v1733
    %v1782 = vtanh.pop %v1734
    %v1783 = vtanh.pop %v1735
    %v1784 = vtanh.pop %v1736
    %v1785 = vtanh.pop %v1737
    %v1786 = vtanh.pop %v1738
    %v1787 = vtanh.pop %v1739
    %v1788 = vtanh.pop %v1740
    %v1789 = vtanh.pop %v1741
    %v1790 = vtanh.pop %v1742
    %v1791 = vtanh.pop %v1743
    %v1792 = vtanh.pop %v1744
    %v1793 = vtanh.pop %v1745
    %v1794 = vtanh.pop %v1746
    %v1795 = vtanh.pop %v1747
    %v1796 = vtanh.pop %v1748
    %v1797 = vtanh.pop %v1749
    %v1798 = vtanh.pop %v1750
    %v1799 = vtanh.pop %v1751
    %v1800 = vtanh.pop %v1752
    %v1801 = vtanh.pop %v1753
    %v1802 = vtanh.pop %v1754
    %v1803 = vtanh.pop %v1755
    %v1804 = vtanh.pop %v1756
    %v1805 = vtanh.pop %v1757
    %v1806 = vtanh.pop %v1758
    %v1807 = vtanh.pop %v1759
    %v1808 = vtanh.pop %v1760
    %v1809 = vtanh.pop %v1761
    %v1810 = vtanh.pop %v1762
    %v1811 = vtanh.pop %v1763
    %v1812 = vtanh.pop %v1764
    %v1813 = vtanh.pop %v1765
    %v1814 = vtanh.pop %v1766
    %1815 = vst.msk [vmem:[#allocation14] sm:$0xff] %vm997, %v1767
    %1816 = vst.msk [vmem:[#allocation14 + $0x8] sm:$0xff] %vm997, %v1768
    %1817 = vst.msk [vmem:[#allocation14 + $0x10] sm:$0xff] %vm997, %v1769
    %1818 = vst.msk [vmem:[#allocation14 + $0x18] sm:$0xff] %vm997, %v1770
    %1819 = vst.msk [vmem:[#allocation14 + $0x20] sm:$0xff] %vm997, %v1771
    %1820 = vst.msk [vmem:[#allocation14 + $0x28] sm:$0xff] %vm997, %v1772
    %1821 = vst.msk [vmem:[#allocation14 + $0x30] sm:$0xff] %vm997, %v1773
    %1822 = vst.msk [vmem:[#allocation14 + $0x38] sm:$0xff] %vm997, %v1774
    %1823 = vst.msk [vmem:[#allocation14 + $0x40] sm:$0xff] %vm997, %v1775
    %1824 = vst.msk [vmem:[#allocation14 + $0x48] sm:$0xff] %vm997, %v1776
    %1825 = vst.msk [vmem:[#allocation14 + $0x50] sm:$0xff] %vm997, %v1777
    %1826 = vst.msk [vmem:[#allocation14 + $0x58] sm:$0xff] %vm997, %v1778
    %1827 = vst.msk [vmem:[#allocation14 + $0x60] sm:$0xff] %vm997, %v1779
    %1828 = vst.msk [vmem:[#allocation14 + $0x68] sm:$0xff] %vm997, %v1780
    %1829 = vst.msk [vmem:[#allocation14 + $0x70] sm:$0xff] %vm997, %v1781
    %1830 = vst.msk [vmem:[#allocation14 + $0x78] sm:$0xff] %vm997, %v1782
    %1831 = vst.msk [vmem:[#allocation14 + $0x80] sm:$0xff] %vm997, %v1783
    %1832 = vst.msk [vmem:[#allocation14 + $0x88] sm:$0xff] %vm997, %v1784
    %1833 = vst.msk [vmem:[#allocation14 + $0x90] sm:$0xff] %vm997, %v1785
    %1834 = vst.msk [vmem:[#allocation14 + $0x98] sm:$0xff] %vm997, %v1786
    %1835 = vst.msk [vmem:[#allocation14 + $0xa0] sm:$0xff] %vm997, %v1787
    %1836 = vst.msk [vmem:[#allocation14 + $0xa8] sm:$0xff] %vm997, %v1788
    %1837 = vst.msk [vmem:[#allocation14 + $0xb0] sm:$0xff] %vm997, %v1789
    %1838 = vst.msk [vmem:[#allocation14 + $0xb8] sm:$0xff] %vm997, %v1790
    %1839 = vst.msk [vmem:[#allocation14 + $0xc0] sm:$0xff] %vm997, %v1791
    %1840 = vst.msk [vmem:[#allocation14 + $0xc8] sm:$0xff] %vm997, %v1792
    %1841 = vst.msk [vmem:[#allocation14 + $0xd0] sm:$0xff] %vm997, %v1793
    %1842 = vst.msk [vmem:[#allocation14 + $0xd8] sm:$0xff] %vm997, %v1794
    %1843 = vst.msk [vmem:[#allocation14 + $0xe0] sm:$0xff] %vm997, %v1795
    %1844 = vst.msk [vmem:[#allocation14 + $0xe8] sm:$0xff] %vm997, %v1796
    %1845 = vst.msk [vmem:[#allocation14 + $0xf0] sm:$0xff] %vm997, %v1797
    %1846 = vst.msk [vmem:[#allocation14 + $0xf8] sm:$0xff] %vm997, %v1798
    %1847 = vst.msk [vmem:[#allocation14 + $0x100] sm:$0xff] %vm997, %v1799
    %1848 = vst.msk [vmem:[#allocation14 + $0x108] sm:$0xff] %vm997, %v1800
    %1849 = vst.msk [vmem:[#allocation14 + $0x110] sm:$0xff] %vm997, %v1801
    %1850 = vst.msk [vmem:[#allocation14 + $0x118] sm:$0xff] %vm997, %v1802
    %1851 = vst.msk [vmem:[#allocation14 + $0x120] sm:$0xff] %vm997, %v1803
    %1852 = vst.msk [vmem:[#allocation14 + $0x128] sm:$0xff] %vm997, %v1804
    %1853 = vst.msk [vmem:[#allocation14 + $0x130] sm:$0xff] %vm997, %v1805
    %1854 = vst.msk [vmem:[#allocation14 + $0x138] sm:$0xff] %vm997, %v1806
    %1855 = vst.msk [vmem:[#allocation14 + $0x140] sm:$0xff] %vm997, %v1807
    %1856 = vst.msk [vmem:[#allocation14 + $0x148] sm:$0xff] %vm997, %v1808
    %1857 = vst.msk [vmem:[#allocation14 + $0x150] sm:$0xff] %vm997, %v1809
    %1858 = vst.msk [vmem:[#allocation14 + $0x158] sm:$0xff] %vm997, %v1810
    %1859 = vst.msk [vmem:[#allocation14 + $0x160] sm:$0xff] %vm997, %v1811
    %1860 = vst.msk [vmem:[#allocation14 + $0x168] sm:$0xff] %vm997, %v1812
    %1861 = vst.msk [vmem:[#allocation14 + $0x170] sm:$0xff] %vm997, %v1813
    %1862 = vst.msk [vmem:[#allocation14 + $0x178] sm:$0xff] %vm997, %v1814
    // Predicated region
    $region45: #{tpu_custom_call.1} parent=1 // pred_check
      _
    $region46: #{tpu_custom_call.1} parent=1 // pred_check_branch
      %1864 = sbr.rel (0) target = $region48
    $region47: #{tpu_custom_call.1} parent=1 // pred_region
      %1866 = vsyncadd [#allocation8], 0
      %s1867 = sshll.u32 [#allocation14], 4
      %s1868 = int_to_ptr.vmem [resolvable:$true] %s1867
      %s1869 = sshll.u32 %s5, 4
      %s1870 = int_to_ptr.hbm [resolvable:$true] %s1869
      %1875 = dma.vmem_to_hbm [thread:$0]  %s1868, 6144, %s1870, [#allocation8], 128, 128, 8
    $region48: #{tpu_custom_call.1} parent=1 // pred_fallthru
      _
    // Predicated region
    $region49: #{tpu_custom_call.1} parent=1 // pred_check
      _
    $region50: #{tpu_custom_call.1} parent=1 // pred_check_branch
      %1877 = sbr.rel (0) target = $region52
    $region51: #{tpu_custom_call.1} parent=1 // pred_region
      %1879 = vsyncadd [#allocation16], 0
      %s1880 = sshll.u32 [#allocation15], 4
      %s1881 = int_to_ptr.vmem [resolvable:$true] %s1880
      %s1882 = sshll.u32 %s6, 4
      %s1883 = int_to_ptr.hbm [resolvable:$true] %s1882
      %1888 = dma.vmem_to_hbm [thread:$0]  %s1881, 256, %s1883, [#allocation16], 128, 128, 8
    $region52: #{tpu_custom_call.1} parent=1 // pred_fallthru
      _
    // Predicated region
    $region53: #{tpu_custom_call.1} parent=1 // pred_check
      _
    $region54: #{tpu_custom_call.1} parent=1 // pred_check_branch
      %1890 = sbr.rel (0) target = $region56
    $region55: #{tpu_custom_call.1} parent=1 // pred_region
      %1892 = dma.done [#allocation8], 6144
    $region56: #{tpu_custom_call.1} parent=1 // pred_fallthru
      _
    // Predicated region
    $region57: #{tpu_custom_call.1} parent=1 // pred_check
      _
    $region58: #{tpu_custom_call.1} parent=1 // pred_check_branch
      %1894 = sbr.rel (0) target = $region60
    $region59: #{tpu_custom_call.1} parent=1 // pred_region
      %1896 = dma.done [#allocation16], 256
    $region60: #{tpu_custom_call.1} parent=1 // pred_fallthru
      _
    %1897 = vsyncpa [#allocation7], 1
    %1898 = vsyncpa [#allocation10], 1
    %1899 = vsyncpa [#allocation13], 1
    %1900 = vsyncpa [#allocation8], 1
    %1901 = vsyncpa [#allocation16], 1

</llo_original>
